<compile_context>
chip_gen: v7x
topology: tpu7x:2x2x1
jax: 0.10.0
libtpu: 0.0.40
codegen_flags: <defaults>
</compile_context>

<pallas_src>
import math
import functools

import jax
import jax.numpy as jnp
from jax.experimental import pallas as pl
from jax.experimental.pallas import tpu as pltpu


def _block_kernel(x_ref,
                  wqkv_ref, bqkv_ref,
                  wo_ref, bo_ref, pos_ref,
                  w1_ref, b1_ref, w2_ref, b2_ref,
                  o_ref, *, num_heads, head_size, eps):
    """One grid step processes a (TB, S, P) block of batch elements."""
    tb, S, P = x_ref.shape
    R = tb * S
    w_dtype = wqkv_ref.dtype                                   # f32 or bf16 (MXU operands)

    x = x_ref[...].astype(jnp.float32).reshape(R, P)           # (R, P) row-wise view

    # ---- attention_norm: LayerNorm over P (affine folded into wqkv/bqkv) ----
    mu = jnp.mean(x, axis=-1, keepdims=True)
    var = jnp.mean(jnp.square(x - mu), axis=-1, keepdims=True)
    xn = (x - mu) * jax.lax.rsqrt(var + eps)

    # ---- Attention: fused QKV projection (one (R,P)x(P,3P) matmul) ----
    qkv = jnp.dot(xn.astype(w_dtype), wqkv_ref[...],
                  preferred_element_type=jnp.float32) + bqkv_ref[...]
    q = qkv[:, 0 * P:1 * P].reshape(tb, S, P)                  # 1/sqrt(hd) already folded in
    k = qkv[:, 1 * P:2 * P].reshape(tb, S, P)
    v = qkv[:, 2 * P:3 * P].reshape(tb, S, P)

    pos = pos_ref[...].astype(jnp.float32)                     # (H, S, S), pre-scaled

    attn = jnp.zeros((R, P), jnp.float32)
    for h in range(num_heads):                                 # static unroll, H small
        lo = h * head_size
        qh = q[:, :, lo:lo + head_size]                        # (TB, S, hd)
        kh = k[:, :, lo:lo + head_size]
        vh = v[:, :, lo:lo + head_size]
        # PyTorch order: (QK^T + pos_emb) / sqrt(head_size); scale pre-folded.
        s = jnp.einsum('bqd,bkd->bqk', qh, kh,
                       preferred_element_type=jnp.float32) + pos[h]
        s = s - jnp.max(s, axis=-1, keepdims=True)
        e = jnp.exp(s)
        denom = jnp.sum(e, axis=-1, keepdims=True)
        p = e * pl.reciprocal(denom, approx=True)              # attn_dropout: identity (eval)
        ctx = jnp.einsum('bqk,bkd->bqd', p, vh,
                         preferred_element_type=jnp.float32)   # (TB, S, hd)
        # Fold the per-head context straight into the output projection:
        # out(concat_h ctx_h) == sum_h ctx_h @ Wo[h*hd:(h+1)*hd, :]
        attn = attn + jnp.dot(ctx.reshape(R, head_size).astype(w_dtype),
                              wo_ref[lo:lo + head_size, :],
                              preferred_element_type=jnp.float32)
    attn = attn + bo_ref[...]                                  # proj_dropout: identity (eval)

    x = attn + x                                               # residual 1

    # ---- ffn_norm: LayerNorm over P (affine folded into w1/b1) ----
    mu2 = jnp.mean(x, axis=-1, keepdims=True)
    var2 = jnp.mean(jnp.square(x - mu2), axis=-1, keepdims=True)
    xn2 = (x - mu2) * jax.lax.rsqrt(var2 + eps)

    # ---- Mlp: fc1 -> gelu -> fc2 ----
    h1 = jnp.dot(xn2.astype(w_dtype), w1_ref[...],
                 preferred_element_type=jnp.float32) + b1_ref[...]
    # TODO(synk): PyTorch F.gelu is exact (erf-based); tanh-approx GELU used here
    # since erf may not lower in Mosaic (max abs deviation ~1e-3).
    h1 = jax.nn.gelu(h1, approximate=True)
    y = jnp.dot(h1.astype(w_dtype), w2_ref[...],
                preferred_element_type=jnp.float32) + b2_ref[...]

    o_ref[...] = (y + x).reshape(tb, S, P).astype(o_ref.dtype)  # residual 2


def prepare_params(params, num_heads, use_bf16_mxu=False):
    """One-time parameter transform: fold LN affines + 1/sqrt(hd), fuse QKV."""
    P = params["wq"].shape[0]
    hd = P // num_heads
    scale = jnp.float32(1.0 / math.sqrt(hd))

    g1 = params["ln1_g"][0][:, None]                    # (P,1): row-scales W (input axis)
    be1 = params["ln1_b"]                               # (1,P)
    g2 = params["ln2_g"][0][:, None]
    be2 = params["ln2_b"]

    # attention_norm affine folded into the QKV projection; q additionally
    # absorbs the 1/sqrt(head_size) scale.
    wq = (g1 * params["wq"]) * scale
    bq = (be1 @ params["wq"] + params["bq"]) * scale
    wk = g1 * params["wk"]
    bk = be1 @ params["wk"] + params["bk"]
    wv = g1 * params["wv"]
    bv = be1 @ params["wv"] + params["bv"]

    wqkv = jnp.concatenate([wq, wk, wv], axis=1)        # (P, 3P)
    bqkv = jnp.concatenate([bq, bk, bv], axis=1)        # (1, 3P)
    pos = params["pos"] * scale                         # (H, S, S)

    # ffn_norm affine folded into fc1.
    w1 = g2 * params["w1"]
    b1 = be2 @ params["w1"] + params["b1"]

    # MXU-operand dtype (bf16 for v6e/v7x if desired); everything element-wise stays f32.
    mx = (lambda w: w.astype(jnp.bfloat16)) if use_bf16_mxu else (lambda w: w)

    return {
        "wqkv": mx(wqkv), "bqkv": bqkv,
        "wo": mx(params["wo"]), "bo": params["bo"],
        "pos": pos,
        "w1": mx(w1), "b1": b1,
        "w2": mx(params["w2"]), "b2": params["b2"],
    }


def block_forward(x, p, num_heads, tb=None):
    B, S, P = x.shape
    head_size = P // num_heads
    hidden = p["w1"].shape[1]

    if tb is None:
        # Fill sublanes: aim for >=128 rows (TB*S) per grid step, capped at B.
        # (Weights + pos are ~tens of KB and a TB*S x P activation block is tiny,
        #  so VMEM capacity is never the constraint here.)
        tb = min(B, max(1, 128 // S))
        # TODO(synk): on v7x halve tb when pl.cdiv(B, tb) == 1 and B > 1 so both
        # TensorCores get a parallel grid step.
    grid = (pl.cdiv(B, tb),)

    kernel = functools.partial(_block_kernel, num_heads=num_heads,
                               head_size=head_size, eps=1e-6)

    def full(shape):
        # Constant block index -> resident across grid steps (no re-DMA per step).
        return pl.BlockSpec(shape, lambda b, _n=len(shape): (0,) * _n)

    in_specs = [
        pl.BlockSpec((tb, S, P), lambda b: (b, 0, 0)),        # x (TB batch elems per step)
        full((P, 3 * P)), full((1, 3 * P)),                   # fused QKV  W^T, b (LN1+scale folded)
        full((P, P)), full((1, P)),                           # out        W^T, b
        full((num_heads, S, S)),                              # position_embeddings (scaled)
        full((P, hidden)), full((1, hidden)),                 # fc1 W^T, b (LN2 folded)
        full((hidden, P)), full((1, P)),                      # fc2 W^T, b
    ]

    return pl.pallas_call(
        kernel,
        grid=grid,
        in_specs=in_specs,
        out_specs=pl.BlockSpec((tb, S, P), lambda b: (b, 0, 0)),
        out_shape=jax.ShapeDtypeStruct((B, S, P), x.dtype),
        compiler_params=pltpu.CompilerParams(dimension_semantics=("parallel",)),
    )(x,
      p["wqkv"], p["bqkv"],
      p["wo"], p["bo"], p["pos"],
      p["w1"], p["b1"], p["w2"], p["b2"])


def block_ref(x, params, num_heads):
    """Pure-JAX reference mirroring the PyTorch Block (same tanh GELU)."""
    B, S, P = x.shape
    hd = P // num_heads
    eps = 1e-6

    def ln(z, g, b):
        mu = jnp.mean(z, -1, keepdims=True)
        var = jnp.mean((z - mu) ** 2, -1, keepdims=True)
        return (z - mu) / jnp.sqrt(var + eps) * g + b

    h = x
    xn = ln(x, params["ln1_g"][0], params["ln1_b"][0])
    q = xn @ params["wq"] + params["bq"][0]
    k = xn @ params["wk"] + params["bk"][0]
    v = xn @ params["wv"] + params["bv"][0]

    def heads(z):
        return z.reshape(B, S, num_heads, hd).transpose(0, 2, 1, 3)

    qh, kh, vh = heads(q), heads(k), heads(v)
    s = jnp.einsum("bhqd,bhkd->bhqk", qh, kh)
    s = (s + params["pos"][None]) / math.sqrt(hd)
    p = jax.nn.softmax(s, axis=-1)
    ctx = jnp.einsum("bhqk,bhkd->bhqd", p, vh).transpose(0, 2, 1, 3).reshape(B, S, P)
    attn = ctx @ params["wo"] + params["bo"][0]
    x = attn + h

    h = x
    xn2 = ln(x, params["ln2_g"][0], params["ln2_b"][0])
    y = jax.nn.gelu(xn2 @ params["w1"] + params["b1"][0], approximate=True)
    y = y @ params["w2"] + params["b2"][0]
    return y + h


if __name__ == "__main__":
    # Small config consistent with the module:
    #   n_patches=32, num_heads=4 -> head_size=8, n_classes=8 (= seq len),
    #   hidden_size=64, batch=2.
    B, S, P, H, HID = 2, 8, 32, 4, 64

    key = jax.random.PRNGKey(0)
    ks = jax.random.split(key, 16)

    def w(k, shape, scale=0.05):
        return (scale * jax.random.normal(k, shape)).astype(jnp.float32)

    params = {
        "ln1_g": jnp.ones((1, P), jnp.float32) + 0.1 * jax.random.normal(ks[14], (1, P)),
        "ln1_b": 0.05 * jax.random.normal(ks[15], (1, P)).astype(jnp.float32),
        "wq": w(ks[0], (P, P)), "bq": w(ks[1], (1, P)),
        "wk": w(ks[2], (P, P)), "bk": w(ks[3], (1, P)),
        "wv": w(ks[4], (P, P)), "bv": w(ks[5], (1, P)),
        "wo": w(ks[6], (P, P)), "bo": w(ks[7], (1, P)),
        "pos": w(ks[8], (H, S, S), scale=1.0),               # torch.randn-like
        "ln2_g": jnp.ones((1, P), jnp.float32),
        "ln2_b": jnp.zeros((1, P), jnp.float32),
        "w1": w(ks[9], (P, HID)),
        "b1": (1e-6 * jax.random.normal(ks[10], (1, HID))).astype(jnp.float32),
        "w2": w(ks[11], (HID, P)),
        "b2": (1e-6 * jax.random.normal(ks[12], (1, P))).astype(jnp.float32),
    }

    x = jax.random.normal(ks[13], (B, S, P), jnp.float32)

    # use_bf16_mxu=False for the exactness check; set True on v6e/v7x for speed
    # (loosen tolerance accordingly).
    prepared = prepare_params(params, H, use_bf16_mxu=False)

    out = jax.block_until_ready(block_forward(x, prepared, H))
    ref = block_ref(x, params, H)

    assert out.shape == (B, S, P), out.shape
    max_err = float(jnp.max(jnp.abs(out - ref)))
    # Tolerance 5e-4 to leave headroom for the EUP approximate-reciprocal
    # softmax normalization and the LN-affine folding reassociation.
    assert jnp.allclose(out, ref, atol=5e-4, rtol=5e-4), f"max_err={max_err}"
    print("KERNEL_OK")
</pallas_src>

<mosaic_0001>
module attributes {stable_mosaic.version = 11 : i64} {
  func.func @_block_kernel(%arg0: i32, %arg1: memref<2x8x32xf32, #tpu.memory_space<vmem>>, %arg2: memref<32x96xf32, #tpu.memory_space<vmem>>, %arg3: memref<1x96xf32, #tpu.memory_space<vmem>>, %arg4: memref<32x32xf32, #tpu.memory_space<vmem>>, %arg5: memref<1x32xf32, #tpu.memory_space<vmem>>, %arg6: memref<4x8x8xf32, #tpu.memory_space<vmem>>, %arg7: memref<32x64xf32, #tpu.memory_space<vmem>>, %arg8: memref<1x64xf32, #tpu.memory_space<vmem>>, %arg9: memref<64x32xf32, #tpu.memory_space<vmem>>, %arg10: memref<1x32xf32, #tpu.memory_space<vmem>>, %arg11: memref<2x8x32xf32, #tpu.memory_space<vmem>>) attributes {dimension_semantics = [#tpu.dimension_semantics<parallel>], iteration_bounds = array<i64: 1>, scalar_prefetch = 0 : i64, scratch_operands = 0 : i64, tpu.core_type = #tpu.core_type<tc>, window_params = [{transform_indices = @transform_0, window_bounds = array<i64: 2, 8, 32>}, {pipeline_mode = #tpu.pipeline_mode<synchronous>, transform_indices = @transform_1, window_bounds = array<i64: 32, 96>}, {pipeline_mode = #tpu.pipeline_mode<synchronous>, transform_indices = @transform_2, window_bounds = array<i64: 1, 96>}, {pipeline_mode = #tpu.pipeline_mode<synchronous>, transform_indices = @transform_3, window_bounds = array<i64: 32, 32>}, {pipeline_mode = #tpu.pipeline_mode<synchronous>, transform_indices = @transform_4, window_bounds = array<i64: 1, 32>}, {pipeline_mode = #tpu.pipeline_mode<synchronous>, transform_indices = @transform_5, window_bounds = array<i64: 4, 8, 8>}, {pipeline_mode = #tpu.pipeline_mode<synchronous>, transform_indices = @transform_6, window_bounds = array<i64: 32, 64>}, {pipeline_mode = #tpu.pipeline_mode<synchronous>, transform_indices = @transform_7, window_bounds = array<i64: 1, 64>}, {pipeline_mode = #tpu.pipeline_mode<synchronous>, transform_indices = @transform_8, window_bounds = array<i64: 64, 32>}, {pipeline_mode = #tpu.pipeline_mode<synchronous>, transform_indices = @transform_9, window_bounds = array<i64: 1, 32>}, {transform_indices = @transform_10, window_bounds = array<i64: 2, 8, 32>}]} {
    %c0 = arith.constant 0 : index
    %c0_0 = arith.constant 0 : index
    %c0_1 = arith.constant 0 : index
    %0 = vector.load %arg1[%c0, %c0_0, %c0_1] : memref<2x8x32xf32, #tpu.memory_space<vmem>>, vector<2x8x32xf32>
    %1 = vector.shape_cast %0 : vector<2x8x32xf32> to vector<16x32xf32>
    %cst = arith.constant dense<0.000000e+00> : vector<16xf32>
    %2 = vector.multi_reduction <add>, %1, %cst [1] : vector<16x32xf32> to vector<16xf32>
    %3 = vector.shape_cast %2 : vector<16xf32> to vector<16x1xf32>
    %cst_2 = arith.constant 3.200000e+01 : f32
    %4 = vector.broadcast %cst_2 : f32 to vector<16x1xf32>
    %5 = arith.divf %3, %4 : vector<16x1xf32>
    %6 = vector.broadcast %5 : vector<16x1xf32> to vector<16x32xf32>
    %7 = arith.subf %1, %6 : vector<16x32xf32>
    %8 = arith.mulf %7, %7 : vector<16x32xf32>
    %cst_3 = arith.constant dense<0.000000e+00> : vector<16xf32>
    %9 = vector.multi_reduction <add>, %8, %cst_3 [1] : vector<16x32xf32> to vector<16xf32>
    %10 = vector.shape_cast %9 : vector<16xf32> to vector<16x1xf32>
    %cst_4 = arith.constant 3.200000e+01 : f32
    %11 = vector.broadcast %cst_4 : f32 to vector<16x1xf32>
    %12 = arith.divf %10, %11 : vector<16x1xf32>
    %13 = vector.broadcast %5 : vector<16x1xf32> to vector<16x32xf32>
    %14 = arith.subf %1, %13 : vector<16x32xf32>
    %cst_5 = arith.constant 9.99999997E-7 : f32
    %15 = vector.broadcast %cst_5 : f32 to vector<16x1xf32>
    %16 = arith.addf %12, %15 : vector<16x1xf32>
    %17 = math.rsqrt %16 : vector<16x1xf32>
    %18 = vector.broadcast %17 : vector<16x1xf32> to vector<16x32xf32>
    %19 = arith.mulf %14, %18 : vector<16x32xf32>
    %c0_6 = arith.constant 0 : index
    %c0_7 = arith.constant 0 : index
    %20 = vector.load %arg2[%c0_6, %c0_7] : memref<32x96xf32, #tpu.memory_space<vmem>>, vector<32x96xf32>
    %cst_8 = arith.constant dense<0.000000e+00> : vector<16x96xf32>
    %21 = tpu.matmul %19, %20, %cst_8 {dimension_numbers = #tpu.dot_dimension_numbers<[1], [0], [0], [1], [0, 0, 1, 1], [], []>} : vector<16x32xf32>, vector<32x96xf32>, vector<16x96xf32> -> vector<16x96xf32>
    %c0_9 = arith.constant 0 : index
    %c0_10 = arith.constant 0 : index
    %22 = vector.load %arg3[%c0_9, %c0_10] : memref<1x96xf32, #tpu.memory_space<vmem>>, vector<1x96xf32>
    %23 = vector.broadcast %22 : vector<1x96xf32> to vector<16x96xf32>
    %24 = arith.addf %21, %23 : vector<16x96xf32>
    %25 = vector.extract_strided_slice %24 {offsets = [0, 0], sizes = [16, 32], strides = [1, 1]} : vector<16x96xf32> to vector<16x32xf32>
    %26 = vector.shape_cast %25 : vector<16x32xf32> to vector<2x8x32xf32>
    %27 = vector.extract_strided_slice %24 {offsets = [0, 32], sizes = [16, 32], strides = [1, 1]} : vector<16x96xf32> to vector<16x32xf32>
    %28 = vector.shape_cast %27 : vector<16x32xf32> to vector<2x8x32xf32>
    %29 = vector.extract_strided_slice %24 {offsets = [0, 64], sizes = [16, 32], strides = [1, 1]} : vector<16x96xf32> to vector<16x32xf32>
    %30 = vector.shape_cast %29 : vector<16x32xf32> to vector<2x8x32xf32>
    %c0_11 = arith.constant 0 : index
    %c0_12 = arith.constant 0 : index
    %c0_13 = arith.constant 0 : index
    %31 = vector.load %arg6[%c0_11, %c0_12, %c0_13] : memref<4x8x8xf32, #tpu.memory_space<vmem>>, vector<4x8x8xf32>
    %cst_14 = arith.constant 0.000000e+00 : f32
    %32 = vector.broadcast %cst_14 : f32 to vector<16x32xf32>
    %33 = vector.extract_strided_slice %26 {offsets = [0, 0, 0], sizes = [2, 8, 8], strides = [1, 1, 1]} : vector<2x8x32xf32> to vector<2x8x8xf32>
    %34 = vector.extract_strided_slice %28 {offsets = [0, 0, 0], sizes = [2, 8, 8], strides = [1, 1, 1]} : vector<2x8x32xf32> to vector<2x8x8xf32>
    %35 = vector.extract_strided_slice %30 {offsets = [0, 0, 0], sizes = [2, 8, 8], strides = [1, 1, 1]} : vector<2x8x32xf32> to vector<2x8x8xf32>
    "tpu.trace_start"() <{level = 10 : i32, message = "bqd,bkd->bqk"}> : () -> ()
    %cst_15 = arith.constant dense<0.000000e+00> : vector<2x8x8xf32>
    %36 = tpu.matmul %33, %34, %cst_15 {dimension_numbers = #tpu.dot_dimension_numbers<[2], [2], [1], [1], [0, 0, 0, 1, 1, 1], [0], [0]>} : vector<2x8x8xf32>, vector<2x8x8xf32>, vector<2x8x8xf32> -> vector<2x8x8xf32>
    "tpu.trace_stop"() : () -> ()
    %37 = vector.extract_strided_slice %31 {offsets = [0, 0, 0], sizes = [1, 8, 8], strides = [1, 1, 1]} : vector<4x8x8xf32> to vector<1x8x8xf32>
    %38 = vector.shape_cast %37 : vector<1x8x8xf32> to vector<8x8xf32>
    %39 = vector.shape_cast %38 : vector<8x8xf32> to vector<1x8x8xf32>
    %40 = vector.broadcast %39 : vector<1x8x8xf32> to vector<2x8x8xf32>
    %41 = arith.addf %36, %40 : vector<2x8x8xf32>
    %cst_16 = arith.constant dense<0xFF800000> : vector<2x8xf32>
    %42 = vector.multi_reduction <maximumf>, %41, %cst_16 [2] : vector<2x8x8xf32> to vector<2x8xf32>
    %43 = vector.shape_cast %42 : vector<2x8xf32> to vector<2x8x1xf32>
    %44 = vector.broadcast %43 : vector<2x8x1xf32> to vector<2x8x8xf32>
    %45 = arith.subf %41, %44 : vector<2x8x8xf32>
    %46 = math.exp %45 : vector<2x8x8xf32>
    %cst_17 = arith.constant dense<0.000000e+00> : vector<2x8xf32>
    %47 = vector.multi_reduction <add>, %46, %cst_17 [2] : vector<2x8x8xf32> to vector<2x8xf32>
    %48 = vector.shape_cast %47 : vector<2x8xf32> to vector<2x8x1xf32>
    %49 = tpu.reciprocal %48 {approx = true} : vector<2x8x1xf32> -> vector<2x8x1xf32>
    %50 = vector.broadcast %49 : vector<2x8x1xf32> to vector<2x8x8xf32>
    %51 = arith.mulf %46, %50 : vector<2x8x8xf32>
    "tpu.trace_start"() <{level = 10 : i32, message = "bqk,bkd->bqd"}> : () -> ()
    %cst_18 = arith.constant dense<0.000000e+00> : vector<2x8x8xf32>
    %52 = tpu.matmul %51, %35, %cst_18 {dimension_numbers = #tpu.dot_dimension_numbers<[2], [1], [1], [2], [0, 0, 0, 1, 1, 2], [0], [0]>} : vector<2x8x8xf32>, vector<2x8x8xf32>, vector<2x8x8xf32> -> vector<2x8x8xf32>
    "tpu.trace_stop"() : () -> ()
    %53 = vector.shape_cast %52 : vector<2x8x8xf32> to vector<16x8xf32>
    %c0_19 = arith.constant 0 : index
    %c0_20 = arith.constant 0 : index
    %54 = vector.load %arg4[%c0_19, %c0_20] : memref<32x32xf32, #tpu.memory_space<vmem>>, vector<8x32xf32>
    %cst_21 = arith.constant dense<0.000000e+00> : vector<16x32xf32>
    %55 = tpu.matmul %53, %54, %cst_21 {dimension_numbers = #tpu.dot_dimension_numbers<[1], [0], [0], [1], [0, 0, 1, 1], [], []>} : vector<16x8xf32>, vector<8x32xf32>, vector<16x32xf32> -> vector<16x32xf32>
    %56 = arith.addf %32, %55 : vector<16x32xf32>
    %57 = vector.extract_strided_slice %26 {offsets = [0, 0, 8], sizes = [2, 8, 8], strides = [1, 1, 1]} : vector<2x8x32xf32> to vector<2x8x8xf32>
    %58 = vector.extract_strided_slice %28 {offsets = [0, 0, 8], sizes = [2, 8, 8], strides = [1, 1, 1]} : vector<2x8x32xf32> to vector<2x8x8xf32>
    %59 = vector.extract_strided_slice %30 {offsets = [0, 0, 8], sizes = [2, 8, 8], strides = [1, 1, 1]} : vector<2x8x32xf32> to vector<2x8x8xf32>
    "tpu.trace_start"() <{level = 10 : i32, message = "bqd,bkd->bqk"}> : () -> ()
    %cst_22 = arith.constant dense<0.000000e+00> : vector<2x8x8xf32>
    %60 = tpu.matmul %57, %58, %cst_22 {dimension_numbers = #tpu.dot_dimension_numbers<[2], [2], [1], [1], [0, 0, 0, 1, 1, 1], [0], [0]>} : vector<2x8x8xf32>, vector<2x8x8xf32>, vector<2x8x8xf32> -> vector<2x8x8xf32>
    "tpu.trace_stop"() : () -> ()
    %61 = vector.extract_strided_slice %31 {offsets = [1, 0, 0], sizes = [1, 8, 8], strides = [1, 1, 1]} : vector<4x8x8xf32> to vector<1x8x8xf32>
    %62 = vector.shape_cast %61 : vector<1x8x8xf32> to vector<8x8xf32>
    %63 = vector.shape_cast %62 : vector<8x8xf32> to vector<1x8x8xf32>
    %64 = vector.broadcast %63 : vector<1x8x8xf32> to vector<2x8x8xf32>
    %65 = arith.addf %60, %64 : vector<2x8x8xf32>
    %cst_23 = arith.constant dense<0xFF800000> : vector<2x8xf32>
    %66 = vector.multi_reduction <maximumf>, %65, %cst_23 [2] : vector<2x8x8xf32> to vector<2x8xf32>
    %67 = vector.shape_cast %66 : vector<2x8xf32> to vector<2x8x1xf32>
    %68 = vector.broadcast %67 : vector<2x8x1xf32> to vector<2x8x8xf32>
    %69 = arith.subf %65, %68 : vector<2x8x8xf32>
    %70 = math.exp %69 : vector<2x8x8xf32>
    %cst_24 = arith.constant dense<0.000000e+00> : vector<2x8xf32>
    %71 = vector.multi_reduction <add>, %70, %cst_24 [2] : vector<2x8x8xf32> to vector<2x8xf32>
    %72 = vector.shape_cast %71 : vector<2x8xf32> to vector<2x8x1xf32>
    %73 = tpu.reciprocal %72 {approx = true} : vector<2x8x1xf32> -> vector<2x8x1xf32>
    %74 = vector.broadcast %73 : vector<2x8x1xf32> to vector<2x8x8xf32>
    %75 = arith.mulf %70, %74 : vector<2x8x8xf32>
    "tpu.trace_start"() <{level = 10 : i32, message = "bqk,bkd->bqd"}> : () -> ()
    %cst_25 = arith.constant dense<0.000000e+00> : vector<2x8x8xf32>
    %76 = tpu.matmul %75, %59, %cst_25 {dimension_numbers = #tpu.dot_dimension_numbers<[2], [1], [1], [2], [0, 0, 0, 1, 1, 2], [0], [0]>} : vector<2x8x8xf32>, vector<2x8x8xf32>, vector<2x8x8xf32> -> vector<2x8x8xf32>
    "tpu.trace_stop"() : () -> ()
    %77 = vector.shape_cast %76 : vector<2x8x8xf32> to vector<16x8xf32>
    %c8 = arith.constant 8 : index
    %c0_26 = arith.constant 0 : index
    %78 = vector.load %arg4[%c8, %c0_26] : memref<32x32xf32, #tpu.memory_space<vmem>>, vector<8x32xf32>
    %cst_27 = arith.constant dense<0.000000e+00> : vector<16x32xf32>
    %79 = tpu.matmul %77, %78, %cst_27 {dimension_numbers = #tpu.dot_dimension_numbers<[1], [0], [0], [1], [0, 0, 1, 1], [], []>} : vector<16x8xf32>, vector<8x32xf32>, vector<16x32xf32> -> vector<16x32xf32>
    %80 = arith.addf %56, %79 : vector<16x32xf32>
    %81 = vector.extract_strided_slice %26 {offsets = [0, 0, 16], sizes = [2, 8, 8], strides = [1, 1, 1]} : vector<2x8x32xf32> to vector<2x8x8xf32>
    %82 = vector.extract_strided_slice %28 {offsets = [0, 0, 16], sizes = [2, 8, 8], strides = [1, 1, 1]} : vector<2x8x32xf32> to vector<2x8x8xf32>
    %83 = vector.extract_strided_slice %30 {offsets = [0, 0, 16], sizes = [2, 8, 8], strides = [1, 1, 1]} : vector<2x8x32xf32> to vector<2x8x8xf32>
    "tpu.trace_start"() <{level = 10 : i32, message = "bqd,bkd->bqk"}> : () -> ()
    %cst_28 = arith.constant dense<0.000000e+00> : vector<2x8x8xf32>
    %84 = tpu.matmul %81, %82, %cst_28 {dimension_numbers = #tpu.dot_dimension_numbers<[2], [2], [1], [1], [0, 0, 0, 1, 1, 1], [0], [0]>} : vector<2x8x8xf32>, vector<2x8x8xf32>, vector<2x8x8xf32> -> vector<2x8x8xf32>
    "tpu.trace_stop"() : () -> ()
    %85 = vector.extract_strided_slice %31 {offsets = [2, 0, 0], sizes = [1, 8, 8], strides = [1, 1, 1]} : vector<4x8x8xf32> to vector<1x8x8xf32>
    %86 = vector.shape_cast %85 : vector<1x8x8xf32> to vector<8x8xf32>
    %87 = vector.shape_cast %86 : vector<8x8xf32> to vector<1x8x8xf32>
    %88 = vector.broadcast %87 : vector<1x8x8xf32> to vector<2x8x8xf32>
    %89 = arith.addf %84, %88 : vector<2x8x8xf32>
    %cst_29 = arith.constant dense<0xFF800000> : vector<2x8xf32>
    %90 = vector.multi_reduction <maximumf>, %89, %cst_29 [2] : vector<2x8x8xf32> to vector<2x8xf32>
    %91 = vector.shape_cast %90 : vector<2x8xf32> to vector<2x8x1xf32>
    %92 = vector.broadcast %91 : vector<2x8x1xf32> to vector<2x8x8xf32>
    %93 = arith.subf %89, %92 : vector<2x8x8xf32>
    %94 = math.exp %93 : vector<2x8x8xf32>
    %cst_30 = arith.constant dense<0.000000e+00> : vector<2x8xf32>
    %95 = vector.multi_reduction <add>, %94, %cst_30 [2] : vector<2x8x8xf32> to vector<2x8xf32>
    %96 = vector.shape_cast %95 : vector<2x8xf32> to vector<2x8x1xf32>
    %97 = tpu.reciprocal %96 {approx = true} : vector<2x8x1xf32> -> vector<2x8x1xf32>
    %98 = vector.broadcast %97 : vector<2x8x1xf32> to vector<2x8x8xf32>
    %99 = arith.mulf %94, %98 : vector<2x8x8xf32>
    "tpu.trace_start"() <{level = 10 : i32, message = "bqk,bkd->bqd"}> : () -> ()
    %cst_31 = arith.constant dense<0.000000e+00> : vector<2x8x8xf32>
    %100 = tpu.matmul %99, %83, %cst_31 {dimension_numbers = #tpu.dot_dimension_numbers<[2], [1], [1], [2], [0, 0, 0, 1, 1, 2], [0], [0]>} : vector<2x8x8xf32>, vector<2x8x8xf32>, vector<2x8x8xf32> -> vector<2x8x8xf32>
    "tpu.trace_stop"() : () -> ()
    %101 = vector.shape_cast %100 : vector<2x8x8xf32> to vector<16x8xf32>
    %c16 = arith.constant 16 : index
    %c0_32 = arith.constant 0 : index
    %102 = vector.load %arg4[%c16, %c0_32] : memref<32x32xf32, #tpu.memory_space<vmem>>, vector<8x32xf32>
    %cst_33 = arith.constant dense<0.000000e+00> : vector<16x32xf32>
    %103 = tpu.matmul %101, %102, %cst_33 {dimension_numbers = #tpu.dot_dimension_numbers<[1], [0], [0], [1], [0, 0, 1, 1], [], []>} : vector<16x8xf32>, vector<8x32xf32>, vector<16x32xf32> -> vector<16x32xf32>
    %104 = arith.addf %80, %103 : vector<16x32xf32>
    %105 = vector.extract_strided_slice %26 {offsets = [0, 0, 24], sizes = [2, 8, 8], strides = [1, 1, 1]} : vector<2x8x32xf32> to vector<2x8x8xf32>
    %106 = vector.extract_strided_slice %28 {offsets = [0, 0, 24], sizes = [2, 8, 8], strides = [1, 1, 1]} : vector<2x8x32xf32> to vector<2x8x8xf32>
    %107 = vector.extract_strided_slice %30 {offsets = [0, 0, 24], sizes = [2, 8, 8], strides = [1, 1, 1]} : vector<2x8x32xf32> to vector<2x8x8xf32>
    "tpu.trace_start"() <{level = 10 : i32, message = "bqd,bkd->bqk"}> : () -> ()
    %cst_34 = arith.constant dense<0.000000e+00> : vector<2x8x8xf32>
    %108 = tpu.matmul %105, %106, %cst_34 {dimension_numbers = #tpu.dot_dimension_numbers<[2], [2], [1], [1], [0, 0, 0, 1, 1, 1], [0], [0]>} : vector<2x8x8xf32>, vector<2x8x8xf32>, vector<2x8x8xf32> -> vector<2x8x8xf32>
    "tpu.trace_stop"() : () -> ()
    %109 = vector.extract_strided_slice %31 {offsets = [3, 0, 0], sizes = [1, 8, 8], strides = [1, 1, 1]} : vector<4x8x8xf32> to vector<1x8x8xf32>
    %110 = vector.shape_cast %109 : vector<1x8x8xf32> to vector<8x8xf32>
    %111 = vector.shape_cast %110 : vector<8x8xf32> to vector<1x8x8xf32>
    %112 = vector.broadcast %111 : vector<1x8x8xf32> to vector<2x8x8xf32>
    %113 = arith.addf %108, %112 : vector<2x8x8xf32>
    %cst_35 = arith.constant dense<0xFF800000> : vector<2x8xf32>
    %114 = vector.multi_reduction <maximumf>, %113, %cst_35 [2] : vector<2x8x8xf32> to vector<2x8xf32>
    %115 = vector.shape_cast %114 : vector<2x8xf32> to vector<2x8x1xf32>
    %116 = vector.broadcast %115 : vector<2x8x1xf32> to vector<2x8x8xf32>
    %117 = arith.subf %113, %116 : vector<2x8x8xf32>
    %118 = math.exp %117 : vector<2x8x8xf32>
    %cst_36 = arith.constant dense<0.000000e+00> : vector<2x8xf32>
    %119 = vector.multi_reduction <add>, %118, %cst_36 [2] : vector<2x8x8xf32> to vector<2x8xf32>
    %120 = vector.shape_cast %119 : vector<2x8xf32> to vector<2x8x1xf32>
    %121 = tpu.reciprocal %120 {approx = true} : vector<2x8x1xf32> -> vector<2x8x1xf32>
    %122 = vector.broadcast %121 : vector<2x8x1xf32> to vector<2x8x8xf32>
    %123 = arith.mulf %118, %122 : vector<2x8x8xf32>
    "tpu.trace_start"() <{level = 10 : i32, message = "bqk,bkd->bqd"}> : () -> ()
    %cst_37 = arith.constant dense<0.000000e+00> : vector<2x8x8xf32>
    %124 = tpu.matmul %123, %107, %cst_37 {dimension_numbers = #tpu.dot_dimension_numbers<[2], [1], [1], [2], [0, 0, 0, 1, 1, 2], [0], [0]>} : vector<2x8x8xf32>, vector<2x8x8xf32>, vector<2x8x8xf32> -> vector<2x8x8xf32>
    "tpu.trace_stop"() : () -> ()
    %125 = vector.shape_cast %124 : vector<2x8x8xf32> to vector<16x8xf32>
    %c24 = arith.constant 24 : index
    %c0_38 = arith.constant 0 : index
    %126 = vector.load %arg4[%c24, %c0_38] : memref<32x32xf32, #tpu.memory_space<vmem>>, vector<8x32xf32>
    %cst_39 = arith.constant dense<0.000000e+00> : vector<16x32xf32>
    %127 = tpu.matmul %125, %126, %cst_39 {dimension_numbers = #tpu.dot_dimension_numbers<[1], [0], [0], [1], [0, 0, 1, 1], [], []>} : vector<16x8xf32>, vector<8x32xf32>, vector<16x32xf32> -> vector<16x32xf32>
    %128 = arith.addf %104, %127 : vector<16x32xf32>
    %c0_40 = arith.constant 0 : index
    %c0_41 = arith.constant 0 : index
    %129 = vector.load %arg5[%c0_40, %c0_41] : memref<1x32xf32, #tpu.memory_space<vmem>>, vector<1x32xf32>
    %130 = vector.broadcast %129 : vector<1x32xf32> to vector<16x32xf32>
    %131 = arith.addf %128, %130 : vector<16x32xf32>
    %132 = arith.addf %131, %1 : vector<16x32xf32>
    %cst_42 = arith.constant dense<0.000000e+00> : vector<16xf32>
    %133 = vector.multi_reduction <add>, %132, %cst_42 [1] : vector<16x32xf32> to vector<16xf32>
    %134 = vector.shape_cast %133 : vector<16xf32> to vector<16x1xf32>
    %cst_43 = arith.constant 3.200000e+01 : f32
    %135 = vector.broadcast %cst_43 : f32 to vector<16x1xf32>
    %136 = arith.divf %134, %135 : vector<16x1xf32>
    %137 = vector.broadcast %136 : vector<16x1xf32> to vector<16x32xf32>
    %138 = arith.subf %132, %137 : vector<16x32xf32>
    %139 = arith.mulf %138, %138 : vector<16x32xf32>
    %cst_44 = arith.constant dense<0.000000e+00> : vector<16xf32>
    %140 = vector.multi_reduction <add>, %139, %cst_44 [1] : vector<16x32xf32> to vector<16xf32>
    %141 = vector.shape_cast %140 : vector<16xf32> to vector<16x1xf32>
    %cst_45 = arith.constant 3.200000e+01 : f32
    %142 = vector.broadcast %cst_45 : f32 to vector<16x1xf32>
    %143 = arith.divf %141, %142 : vector<16x1xf32>
    %144 = vector.broadcast %136 : vector<16x1xf32> to vector<16x32xf32>
    %145 = arith.subf %132, %144 : vector<16x32xf32>
    %cst_46 = arith.constant 9.99999997E-7 : f32
    %146 = vector.broadcast %cst_46 : f32 to vector<16x1xf32>
    %147 = arith.addf %143, %146 : vector<16x1xf32>
    %148 = math.rsqrt %147 : vector<16x1xf32>
    %149 = vector.broadcast %148 : vector<16x1xf32> to vector<16x32xf32>
    %150 = arith.mulf %145, %149 : vector<16x32xf32>
    %c0_47 = arith.constant 0 : index
    %c0_48 = arith.constant 0 : index
    %151 = vector.load %arg7[%c0_47, %c0_48] : memref<32x64xf32, #tpu.memory_space<vmem>>, vector<32x64xf32>
    %cst_49 = arith.constant dense<0.000000e+00> : vector<16x64xf32>
    %152 = tpu.matmul %150, %151, %cst_49 {dimension_numbers = #tpu.dot_dimension_numbers<[1], [0], [0], [1], [0, 0, 1, 1], [], []>} : vector<16x32xf32>, vector<32x64xf32>, vector<16x64xf32> -> vector<16x64xf32>
    %c0_50 = arith.constant 0 : index
    %c0_51 = arith.constant 0 : index
    %153 = vector.load %arg8[%c0_50, %c0_51] : memref<1x64xf32, #tpu.memory_space<vmem>>, vector<1x64xf32>
    %154 = vector.broadcast %153 : vector<1x64xf32> to vector<16x64xf32>
    %155 = arith.addf %152, %154 : vector<16x64xf32>
    %156 = arith.mulf %155, %155 : vector<16x64xf32>
    %157 = arith.mulf %155, %156 : vector<16x64xf32>
    %cst_52 = arith.constant 4.471500e-02 : f32
    %158 = vector.broadcast %cst_52 : f32 to vector<16x64xf32>
    %159 = arith.mulf %158, %157 : vector<16x64xf32>
    %160 = arith.addf %155, %159 : vector<16x64xf32>
    %cst_53 = arith.constant 0.797884583 : f32
    %161 = vector.broadcast %cst_53 : f32 to vector<16x64xf32>
    %162 = arith.mulf %161, %160 : vector<16x64xf32>
    %163 = math.tanh %162 : vector<16x64xf32>
    %cst_54 = arith.constant 1.000000e+00 : f32
    %164 = vector.broadcast %cst_54 : f32 to vector<16x64xf32>
    %165 = arith.addf %164, %163 : vector<16x64xf32>
    %cst_55 = arith.constant 5.000000e-01 : f32
    %166 = vector.broadcast %cst_55 : f32 to vector<16x64xf32>
    %167 = arith.mulf %166, %165 : vector<16x64xf32>
    %168 = arith.mulf %155, %167 : vector<16x64xf32>
    %c0_56 = arith.constant 0 : index
    %c0_57 = arith.constant 0 : index
    %169 = vector.load %arg9[%c0_56, %c0_57] : memref<64x32xf32, #tpu.memory_space<vmem>>, vector<64x32xf32>
    %cst_58 = arith.constant dense<0.000000e+00> : vector<16x32xf32>
    %170 = tpu.matmul %168, %169, %cst_58 {dimension_numbers = #tpu.dot_dimension_numbers<[1], [0], [0], [1], [0, 0, 1, 1], [], []>} : vector<16x64xf32>, vector<64x32xf32>, vector<16x32xf32> -> vector<16x32xf32>
    %c0_59 = arith.constant 0 : index
    %c0_60 = arith.constant 0 : index
    %171 = vector.load %arg10[%c0_59, %c0_60] : memref<1x32xf32, #tpu.memory_space<vmem>>, vector<1x32xf32>
    %172 = vector.broadcast %171 : vector<1x32xf32> to vector<16x32xf32>
    %173 = arith.addf %170, %172 : vector<16x32xf32>
    %174 = arith.addf %173, %132 : vector<16x32xf32>
    %175 = vector.shape_cast %174 : vector<16x32xf32> to vector<2x8x32xf32>
    %c0_61 = arith.constant 0 : index
    %c0_62 = arith.constant 0 : index
    %c0_63 = arith.constant 0 : index
    %176 = vector.load %arg11[%c0_61, %c0_62, %c0_63] : memref<2x8x32xf32, #tpu.memory_space<vmem>>, vector<2x8x32xf32>
    tpu.vector_store %arg11[%c0_61, %c0_62, %c0_63], %175 {strides = array<i32>} : memref<2x8x32xf32, #tpu.memory_space<vmem>>, vector<2x8x32xf32>,
    return
  }
  func.func @transform_0(%arg0: i32) -> (i32, i32, i32) {
    %c0_i32 = arith.constant 0 : i32
    %c0_i32_0 = arith.constant 0 : i32
    %c0_i32_1 = arith.constant 0 : i32
    return %arg0, %c0_i32, %c0_i32_0 : i32, i32, i32
  }
  func.func @transform_1(%arg0: i32) -> (i32, i32) {
    %c0_i32 = arith.constant 0 : i32
    %c0_i32_0 = arith.constant 0 : i32
    %c0_i32_1 = arith.constant 0 : i32
    return %c0_i32, %c0_i32_0 : i32, i32
  }
  func.func @transform_2(%arg0: i32) -> (i32, i32) {
    %c0_i32 = arith.constant 0 : i32
    %c0_i32_0 = arith.constant 0 : i32
    %c0_i32_1 = arith.constant 0 : i32
    return %c0_i32, %c0_i32_0 : i32, i32
  }
  func.func @transform_3(%arg0: i32) -> (i32, i32) {
    %c0_i32 = arith.constant 0 : i32
    %c0_i32_0 = arith.constant 0 : i32
    %c0_i32_1 = arith.constant 0 : i32
    return %c0_i32, %c0_i32_0 : i32, i32
  }
  func.func @transform_4(%arg0: i32) -> (i32, i32) {
    %c0_i32 = arith.constant 0 : i32
    %c0_i32_0 = arith.constant 0 : i32
    %c0_i32_1 = arith.constant 0 : i32
    return %c0_i32, %c0_i32_0 : i32, i32
  }
  func.func @transform_5(%arg0: i32) -> (i32, i32, i32) {
    %c0_i32 = arith.constant 0 : i32
    %c0_i32_0 = arith.constant 0 : i32
    %c0_i32_1 = arith.constant 0 : i32
    %c0_i32_2 = arith.constant 0 : i32
    return %c0_i32, %c0_i32_0, %c0_i32_1 : i32, i32, i32
  }
  func.func @transform_6(%arg0: i32) -> (i32, i32) {
    %c0_i32 = arith.constant 0 : i32
    %c0_i32_0 = arith.constant 0 : i32
    %c0_i32_1 = arith.constant 0 : i32
    return %c0_i32, %c0_i32_0 : i32, i32
  }
  func.func @transform_7(%arg0: i32) -> (i32, i32) {
    %c0_i32 = arith.constant 0 : i32
    %c0_i32_0 = arith.constant 0 : i32
    %c0_i32_1 = arith.constant 0 : i32
    return %c0_i32, %c0_i32_0 : i32, i32
  }
  func.func @transform_8(%arg0: i32) -> (i32, i32) {
    %c0_i32 = arith.constant 0 : i32
    %c0_i32_0 = arith.constant 0 : i32
    %c0_i32_1 = arith.constant 0 : i32
    return %c0_i32, %c0_i32_0 : i32, i32
  }
  func.func @transform_9(%arg0: i32) -> (i32, i32) {
    %c0_i32 = arith.constant 0 : i32
    %c0_i32_0 = arith.constant 0 : i32
    %c0_i32_1 = arith.constant 0 : i32
    return %c0_i32, %c0_i32_0 : i32, i32
  }
  func.func @transform_10(%arg0: i32) -> (i32, i32, i32) {
    %c0_i32 = arith.constant 0 : i32
    %c0_i32_0 = arith.constant 0 : i32
    %c0_i32_1 = arith.constant 0 : i32
    return %arg0, %c0_i32, %c0_i32_0 : i32, i32, i32
  }
}

</mosaic_0001>

<llo_original>
// kernel: tpu_custom_call.1
$region0: #{tpu_custom_call.1}
  #allocation0 [shape = 'u32[]', space=smem, size = 0x4, offset = 0x4, fixed_abs, tag = 'smem constant byte address 0x4 - core index']
  #allocation1 [shape = 'u32[144,128]{1,0:T(1,128)}', space=vmem, size = 0x12000, scoped, tag = 'internal scratch']
  %s0 = inlined_call_operand.hbm [shape: f32[2,8,32], index: 0, kind: input, shape index: {}]
  %s1 = inlined_call_operand.vmem [shape: f32[32,96], index: 1, kind: input, shape index: {}]
  %s2 = inlined_call_operand.vmem [shape: f32[1,96], index: 2, kind: input, shape index: {}]
  %s3 = inlined_call_operand.vmem [shape: f32[32,32], index: 3, kind: input, shape index: {}]
  %s4 = inlined_call_operand.vmem [shape: f32[1,32], index: 4, kind: input, shape index: {}]
  %s5 = inlined_call_operand.vmem [shape: f32[4,8,8], index: 5, kind: input, shape index: {}]
  %s6 = inlined_call_operand.hbm [shape: f32[32,64], index: 6, kind: input, shape index: {}]
  %s7 = inlined_call_operand.vmem [shape: f32[1,64], index: 7, kind: input, shape index: {}]
  %s8 = inlined_call_operand.vmem [shape: f32[64,32], index: 8, kind: input, shape index: {}]
  %s9 = inlined_call_operand.vmem [shape: f32[1,32], index: 9, kind: input, shape index: {}]
  %s10 = inlined_call_operand.hbm [shape: f32[2,8,32], index: 10, kind: output, shape index: {}]
  %s11 = sld [smem:[#allocation0]]
  $region58: #{tpu_custom_call.1} parent=0
    _
  %s13 = ssub.s32 1, %s11
  %s14 = scalar_select 0, %s13, %s11
  $region1: #{tpu_custom_call.1} parent=0
    #allocation2 [shape = 'u8[8192]{0}', space=vmem, size = 0x2000, scoped, tag = 'input window, operand 0, single buffered']
    #allocation3 [shape = 's32[1]{0}', space=sflag, size = 0x4, scoped, tag = 'scoped memory for tpu_custom_call.1']
    #allocation4 [shape = 's32[1]{0}', space=sflag, size = 0x4, scoped, tag = 'scoped memory for tpu_custom_call.1']
    #allocation5 [shape = 'u8[16384]{0}', space=vmem, size = 0x4000, scoped, tag = 'input window, operand 6, single buffered']
    #allocation6 [shape = 's32[1]{0}', space=sflag, size = 0x4, scoped, tag = 'scoped memory for tpu_custom_call.1']
    #allocation7 [shape = 'u8[8192]{0}', space=vmem, size = 0x2000, scoped, tag = 'output window, operand 0, single buffered']
    %15 = vsyncpa [#allocation3], 0
    %16 = vsyncpa [#allocation6], 0
    %17 = vsyncpa [#allocation4], 0
    // Predicated region
    $region2: #{tpu_custom_call.1} parent=1 // pred_check
      _
    $region3: #{tpu_custom_call.1} parent=1 // pred_check_branch
      %19 = sbr.rel (0) target = $region5
    $region4: #{tpu_custom_call.1} parent=1 // pred_region
      %s21 = ssub.s32 256, 256
      %22 = vsyncadd [#allocation3], %s21
      %s23 = sshll.u32 [#allocation2], 4
      %s24 = int_to_ptr.vmem [resolvable:$true] %s23
      %29 = dma.hbm_to_vmem [thread:$0]  %s0, 256, %s24, [#allocation3], 128, 128, 8
    $region5: #{tpu_custom_call.1} parent=1 // pred_fallthru
      _
    // Predicated region
    $region6: #{tpu_custom_call.1} parent=1 // pred_check
      _
    $region7: #{tpu_custom_call.1} parent=1 // pred_check_branch
      %31 = sbr.rel (0) target = $region9
    $region8: #{tpu_custom_call.1} parent=1 // pred_region
      _
    $region9: #{tpu_custom_call.1} parent=1 // pred_fallthru
      _
    // Predicated region
    $region10: #{tpu_custom_call.1} parent=1 // pred_check
      _
    $region11: #{tpu_custom_call.1} parent=1 // pred_check_branch
      %33 = sbr.rel (0) target = $region13
    $region12: #{tpu_custom_call.1} parent=1 // pred_region
      _
    $region13: #{tpu_custom_call.1} parent=1 // pred_fallthru
      _
    // Predicated region
    $region14: #{tpu_custom_call.1} parent=1 // pred_check
      _
    $region15: #{tpu_custom_call.1} parent=1 // pred_check_branch
      %35 = sbr.rel (0) target = $region17
    $region16: #{tpu_custom_call.1} parent=1 // pred_region
      _
    $region17: #{tpu_custom_call.1} parent=1 // pred_fallthru
      _
    // Predicated region
    $region18: #{tpu_custom_call.1} parent=1 // pred_check
      _
    $region19: #{tpu_custom_call.1} parent=1 // pred_check_branch
      %37 = sbr.rel (0) target = $region21
    $region20: #{tpu_custom_call.1} parent=1 // pred_region
      _
    $region21: #{tpu_custom_call.1} parent=1 // pred_fallthru
      _
    // Predicated region
    $region22: #{tpu_custom_call.1} parent=1 // pred_check
      _
    $region23: #{tpu_custom_call.1} parent=1 // pred_check_branch
      %39 = sbr.rel (0) target = $region25
    $region24: #{tpu_custom_call.1} parent=1 // pred_region
      _
    $region25: #{tpu_custom_call.1} parent=1 // pred_fallthru
      _
    // Predicated region
    $region26: #{tpu_custom_call.1} parent=1 // pred_check
      _
    $region27: #{tpu_custom_call.1} parent=1 // pred_check_branch
      %41 = sbr.rel (0) target = $region29
    $region28: #{tpu_custom_call.1} parent=1 // pred_region
      %s43 = ssub.s32 512, 512
      %44 = vsyncadd [#allocation6], %s43
      %s45 = sshll.u32 [#allocation5], 4
      %s46 = int_to_ptr.vmem [resolvable:$true] %s45
      %51 = dma.hbm_to_vmem [thread:$0]  %s6, 512, %s46, [#allocation6], 128, 128, 8
    $region29: #{tpu_custom_call.1} parent=1 // pred_fallthru
      _
    // Predicated region
    $region30: #{tpu_custom_call.1} parent=1 // pred_check
      _
    $region31: #{tpu_custom_call.1} parent=1 // pred_check_branch
      %53 = sbr.rel (0) target = $region33
    $region32: #{tpu_custom_call.1} parent=1 // pred_region
      _
    $region33: #{tpu_custom_call.1} parent=1 // pred_fallthru
      _
    // Predicated region
    $region34: #{tpu_custom_call.1} parent=1 // pred_check
      _
    $region35: #{tpu_custom_call.1} parent=1 // pred_check_branch
      %55 = sbr.rel (0) target = $region37
    $region36: #{tpu_custom_call.1} parent=1 // pred_region
      _
    $region37: #{tpu_custom_call.1} parent=1 // pred_fallthru
      _
    // Predicated region
    $region38: #{tpu_custom_call.1} parent=1 // pred_check
      _
    $region39: #{tpu_custom_call.1} parent=1 // pred_check_branch
      %57 = sbr.rel (0) target = $region41
    $region40: #{tpu_custom_call.1} parent=1 // pred_region
      _
    $region41: #{tpu_custom_call.1} parent=1 // pred_fallthru
      _
    // Predicated region
    $region42: #{tpu_custom_call.1} parent=1 // pred_check
      _
    $region43: #{tpu_custom_call.1} parent=1 // pred_check_branch
      %59 = sbr.rel (0) target = $region45
    $region44: #{tpu_custom_call.1} parent=1 // pred_region
      %60 = dma.done [#allocation3], 256
    $region45: #{tpu_custom_call.1} parent=1 // pred_fallthru
      _
    // Predicated region
    $region46: #{tpu_custom_call.1} parent=1 // pred_check
      _
    $region47: #{tpu_custom_call.1} parent=1 // pred_check_branch
      %62 = sbr.rel (0) target = $region49
    $region48: #{tpu_custom_call.1} parent=1 // pred_region
      %63 = dma.done [#allocation6], 512
    $region49: #{tpu_custom_call.1} parent=1 // pred_fallthru
      _
    %v64 = vld [vmem:[#allocation2] sm:$0xff]
    %v65 = vld [vmem:[#allocation2 + $0x8] sm:$0xff]
    %vm66 = vcmask 261120
    %v67 = vsel %vm66, %v64, 0.0
    %68 = vadd.xlane.f32.xlu0 %v67
    %v69 = vpop.xlane.xlu0 %68
    %v70 = vsel %vm66, %v65, 0.0
    %71 = vadd.xlane.f32.xlu0 %v70
    %v72 = vpop.xlane.xlu0 %71
    %v73 = vrcp.pop 32.0
    %v74 = vmul.f32 %v69, %v73
    %v75 = vmul.f32 %v72, %v73
    %v76 = vsub.f32 %v64, %v74
    %v77 = vsub.f32 %v65, %v75
    %v78 = vmul.f32 %v76, %v76
    %v79 = vmul.f32 %v77, %v77
    %v80 = vsel %vm66, %v78, 0.0
    %81 = vadd.xlane.f32.xlu0 %v80
    %v82 = vpop.xlane.xlu0 %81
    %v83 = vsel %vm66, %v79, 0.0
    %84 = vadd.xlane.f32.xlu0 %v83
    %v85 = vpop.xlane.xlu0 %84
    %v86 = vmul.f32 %v82, %v73
    %v87 = vmul.f32 %v85, %v73
    %v88 = vadd.f32 %v86, 1e-06
    %v89 = vadd.f32 %v87, 1e-06
    %v90 = vrsqrt.pop %v88
    %v91 = vrsqrt.pop %v89
    %v92 = vmul.f32 %v76, %v90
    %v93 = vmul.f32 %v77, %v91
    %v94 = vld [vmem:[%s1] sm:$0xff]
    %v95 = vld [vmem:[%s1 + $0x8] sm:$0xff]
    %v96 = vld [vmem:[%s1 + $0x10] sm:$0xff]
    %v97 = vld [vmem:[%s1 + $0x18] sm:$0xff]
    %v98 = vld [vmem:[%s2] sm:$0x1]
    %v100 = vlaneseq
    %v101 = vshrl.u32 %v100, 7
    %v102 = vsub.s32 0, %v101
    %v103 = vrot.slane %v98, %v102
    %v106 = vsel %vm66, %v92, 0
    %v109 = vsel %vm66, %v93, 0
    %111 = vmatprep.subr.mxu0 0.0
    %112 = vmatpush1.msra.mxu0 %v94
    %113 = vmatprep.subr.mxu0 0.0
    %114 = vmatpush1.msra.mxu0 %v95
    %115 = vmatprep.subr.mxu0 0.0
    %116 = vmatpush1.msra.mxu0 %v96
    %117 = vmatprep.subr.mxu0 0.0
    %118 = vmatpush1.msra.mxu0 %v97
    %119 = vmatprep.subr.mxu0 0.0
    %120 = vmatpush1.msra.mxu0 0.0
    %121 = vmatprep.subr.mxu0 0.0
    %122 = vmatpush1.msra.mxu0 0.0
    %123 = vmatprep.subr.mxu0 0.0
    %124 = vmatpush1.msra.mxu0 0.0
    %125 = vmatprep.subr.mxu0 0.0
    %126 = vmatpush1.msra.mxu0 0.0
    %127 = vmatprep.subr.mxu0 0.0
    %128 = vmatpush1.msra.mxu0 0.0
    %129 = vmatprep.subr.mxu0 0.0
    %130 = vmatpush1.msra.mxu0 0.0
    %131 = vmatprep.subr.mxu0 0.0
    %132 = vmatpush1.msra.mxu0 0.0
    %133 = vmatprep.subr.mxu0 0.0
    %134 = vmatpush1.msra.mxu0 0.0
    %135 = vmatprep.subr.mxu0 0.0
    %136 = vmatpush1.msra.mxu0 0.0
    %137 = vmatprep.subr.mxu0 0.0
    %138 = vmatpush1.msra.mxu0 0.0
    %139 = vmatprep.subr.mxu0 0.0
    %140 = vmatpush1.msra.mxu0 0.0
    %141 = vmatprep.subr.mxu0 0.0
    %142 = vmatpush1.msra.mxu0 0.0
    %143 = vmatprep.subr.mxu0 0.0
    %144 = vmatpush1.msra.mxu0 0.0
    %145 = vmatprep.subr.mxu0 0.0
    %146 = vmatpush1.msra.mxu0 0.0
    %147 = vmatprep.subr.mxu0 0.0
    %148 = vmatpush1.msra.mxu0 0.0
    %149 = vmatprep.subr.mxu0 0.0
    %150 = vmatpush1.msra.mxu0 0.0
    %151 = vmatprep.subr.mxu0 0.0
    %152 = vmatpush1.msra.mxu0 0.0
    %153 = vmatprep.subr.mxu0 0.0
    %154 = vmatpush1.msra.mxu0 0.0
    %155 = vmatprep.subr.mxu0 0.0
    %156 = vmatpush1.msra.mxu0 0.0
    %157 = vmatprep.subr.mxu0 0.0
    %158 = vmatpush1.msra.mxu0 0.0
    %159 = vmatprep.subr.mxu0 0.0
    %160 = vmatpush1.msra.mxu0 0.0
    %161 = vmatprep.subr.mxu0 0.0
    %162 = vmatpush1.msra.mxu0 0.0
    %163 = vmatprep.subr.mxu0 0.0
    %164 = vmatpush1.msra.mxu0 0.0
    %165 = vmatprep.subr.mxu0 0.0
    %166 = vmatpush1.msra.mxu0 0.0
    %167 = vmatprep.subr.mxu0 0.0
    %168 = vmatpush1.msra.mxu0 0.0
    %169 = vmatprep.subr.mxu0 0.0
    %170 = vmatpush1.msra.mxu0 0.0
    %171 = vmatprep.subr.mxu0 0.0
    %172 = vmatpush1.msra.mxu0 0.0
    %173 = vmatprep.subr.mxu0 0.0
    %174 = vmatpush1.msra.mxu0 0.0
    %175 = vmatprep.mubr.f32.mxu0 0.0
    %176 = vmatmul.mubr.f32.gmra.mrb[0].mxu0 %v106
    %v177 = vpop.f32.mrb[0].mxu0
    %v178 = vadd.f32 %v103, %v177
    %v179 = vpop.f32.mrb[0].mxu0
    %180 = vmatprep.mubr.f32.mxu0 0.0
    %181 = vmatmul.mubr.f32.gmra.mrb[0].mxu0 %v109
    %v182 = vpop.f32.mrb[0].mxu0
    %v183 = vadd.f32 %v103, %v182
    %v184 = vpop.f32.mrb[0].mxu0
    %185 = vdwg.mxu0
    %v186 = vld [vmem:[%s5] sm:$0xff]
    %v187 = vld [vmem:[%s5 + $0x8] sm:$0xff]
    %v188 = vld [vmem:[%s5 + $0x10] sm:$0xff]
    %v189 = vld [vmem:[%s5 + $0x18] sm:$0xff]
    %191 = vrot.lane.b32.xlu0 %v178, 96
    %v192 = vpop.permute.xlu0 %191
    %vm193 = vcmask 64512
    %v194 = vsel %vm193, %v178, 0
    %v196 = vsel %vm193, %v192, 0
    %198 = vmatprep.subr.mxu0 0.0
    %199 = vmatpush1.xpose.msra.mxu0 %v196
    %200 = vmatprep.subr.mxu0 0.0
    %201 = vmatpush1.xpose.msra.mxu0 0.0
    %202 = vmatprep.subr.mxu0 0.0
    %203 = vmatpush1.xpose.msra.mxu0 0.0
    %204 = vmatprep.subr.mxu0 0.0
    %205 = vmatpush1.xpose.msra.mxu0 0.0
    %206 = vmatprep.subr.mxu0 0.0
    %207 = vmatpush1.xpose.msra.mxu0 0.0
    %208 = vmatprep.subr.mxu0 0.0
    %209 = vmatpush1.xpose.msra.mxu0 0.0
    %210 = vmatprep.subr.mxu0 0.0
    %211 = vmatpush1.xpose.msra.mxu0 0.0
    %212 = vmatprep.subr.mxu0 0.0
    %213 = vmatpush1.xpose.msra.mxu0 0.0
    %214 = vmatprep.subr.mxu0 0.0
    %215 = vmatpush1.xpose.msra.mxu0 0.0
    %216 = vmatprep.subr.mxu0 0.0
    %217 = vmatpush1.xpose.msra.mxu0 0.0
    %218 = vmatprep.subr.mxu0 0.0
    %219 = vmatpush1.xpose.msra.mxu0 0.0
    %220 = vmatprep.subr.mxu0 0.0
    %221 = vmatpush1.xpose.msra.mxu0 0.0
    %222 = vmatprep.subr.mxu0 0.0
    %223 = vmatpush1.xpose.msra.mxu0 0.0
    %224 = vmatprep.subr.mxu0 0.0
    %225 = vmatpush1.xpose.msra.mxu0 0.0
    %226 = vmatprep.subr.mxu0 0.0
    %227 = vmatpush1.xpose.msra.mxu0 0.0
    %228 = vmatprep.subr.mxu0 0.0
    %229 = vmatpush1.xpose.msra.mxu0 0.0
    %230 = vmatprep.subr.mxu0 0.0
    %231 = vmatpush1.xpose.msra.mxu0 0.0
    %232 = vmatprep.subr.mxu0 0.0
    %233 = vmatpush1.xpose.msra.mxu0 0.0
    %234 = vmatprep.subr.mxu0 0.0
    %235 = vmatpush1.xpose.msra.mxu0 0.0
    %236 = vmatprep.subr.mxu0 0.0
    %237 = vmatpush1.xpose.msra.mxu0 0.0
    %238 = vmatprep.subr.mxu0 0.0
    %239 = vmatpush1.xpose.msra.mxu0 0.0
    %240 = vmatprep.subr.mxu0 0.0
    %241 = vmatpush1.xpose.msra.mxu0 0.0
    %242 = vmatprep.subr.mxu0 0.0
    %243 = vmatpush1.xpose.msra.mxu0 0.0
    %244 = vmatprep.subr.mxu0 0.0
    %245 = vmatpush1.xpose.msra.mxu0 0.0
    %246 = vmatprep.subr.mxu0 0.0
    %247 = vmatpush1.xpose.msra.mxu0 0.0
    %248 = vmatprep.subr.mxu0 0.0
    %249 = vmatpush1.xpose.msra.mxu0 0.0
    %250 = vmatprep.subr.mxu0 0.0
    %251 = vmatpush1.xpose.msra.mxu0 0.0
    %252 = vmatprep.subr.mxu0 0.0
    %253 = vmatpush1.xpose.msra.mxu0 0.0
    %254 = vmatprep.subr.mxu0 0.0
    %255 = vmatpush1.xpose.msra.mxu0 0.0
    %256 = vmatprep.subr.mxu0 0.0
    %257 = vmatpush1.xpose.msra.mxu0 0.0
    %258 = vmatprep.subr.mxu0 0.0
    %259 = vmatpush1.xpose.msra.mxu0 0.0
    %260 = vmatprep.subr.mxu0 0.0
    %261 = vmatpush1.xpose.msra.mxu0 0.0
    %262 = vmatprep.mubr.f32.mxu0 0.0
    %263 = vmatmul.mubr.f32.gmra.mrb[0].mxu0 %v194
    %v264 = vpop.f32.mrb[0].mxu0
    %v265 = vadd.f32 %v186, %v264
    %v266 = vpop.f32.mrb[0].mxu0
    %267 = vdwg.mxu0
    %269 = vrot.lane.b32.xlu0 %v183, 96
    %v270 = vpop.permute.xlu0 %269
    %v271 = vsel %vm193, %v183, 0
    %v273 = vsel %vm193, %v270, 0
    %275 = vmatprep.subr.mxu0 0.0
    %276 = vmatpush1.xpose.msra.mxu0 %v273
    %277 = vmatprep.subr.mxu0 0.0
    %278 = vmatpush1.xpose.msra.mxu0 0.0
    %279 = vmatprep.subr.mxu0 0.0
    %280 = vmatpush1.xpose.msra.mxu0 0.0
    %281 = vmatprep.subr.mxu0 0.0
    %282 = vmatpush1.xpose.msra.mxu0 0.0
    %283 = vmatprep.subr.mxu0 0.0
    %284 = vmatpush1.xpose.msra.mxu0 0.0
    %285 = vmatprep.subr.mxu0 0.0
    %286 = vmatpush1.xpose.msra.mxu0 0.0
    %287 = vmatprep.subr.mxu0 0.0
    %288 = vmatpush1.xpose.msra.mxu0 0.0
    %289 = vmatprep.subr.mxu0 0.0
    %290 = vmatpush1.xpose.msra.mxu0 0.0
    %291 = vmatprep.subr.mxu0 0.0
    %292 = vmatpush1.xpose.msra.mxu0 0.0
    %293 = vmatprep.subr.mxu0 0.0
    %294 = vmatpush1.xpose.msra.mxu0 0.0
    %295 = vmatprep.subr.mxu0 0.0
    %296 = vmatpush1.xpose.msra.mxu0 0.0
    %297 = vmatprep.subr.mxu0 0.0
    %298 = vmatpush1.xpose.msra.mxu0 0.0
    %299 = vmatprep.subr.mxu0 0.0
    %300 = vmatpush1.xpose.msra.mxu0 0.0
    %301 = vmatprep.subr.mxu0 0.0
    %302 = vmatpush1.xpose.msra.mxu0 0.0
    %303 = vmatprep.subr.mxu0 0.0
    %304 = vmatpush1.xpose.msra.mxu0 0.0
    %305 = vmatprep.subr.mxu0 0.0
    %306 = vmatpush1.xpose.msra.mxu0 0.0
    %307 = vmatprep.subr.mxu0 0.0
    %308 = vmatpush1.xpose.msra.mxu0 0.0
    %309 = vmatprep.subr.mxu0 0.0
    %310 = vmatpush1.xpose.msra.mxu0 0.0
    %311 = vmatprep.subr.mxu0 0.0
    %312 = vmatpush1.xpose.msra.mxu0 0.0
    %313 = vmatprep.subr.mxu0 0.0
    %314 = vmatpush1.xpose.msra.mxu0 0.0
    %315 = vmatprep.subr.mxu0 0.0
    %316 = vmatpush1.xpose.msra.mxu0 0.0
    %317 = vmatprep.subr.mxu0 0.0
    %318 = vmatpush1.xpose.msra.mxu0 0.0
    %319 = vmatprep.subr.mxu0 0.0
    %320 = vmatpush1.xpose.msra.mxu0 0.0
    %321 = vmatprep.subr.mxu0 0.0
    %322 = vmatpush1.xpose.msra.mxu0 0.0
    %323 = vmatprep.subr.mxu0 0.0
    %324 = vmatpush1.xpose.msra.mxu0 0.0
    %325 = vmatprep.subr.mxu0 0.0
    %326 = vmatpush1.xpose.msra.mxu0 0.0
    %327 = vmatprep.subr.mxu0 0.0
    %328 = vmatpush1.xpose.msra.mxu0 0.0
    %329 = vmatprep.subr.mxu0 0.0
    %330 = vmatpush1.xpose.msra.mxu0 0.0
    %331 = vmatprep.subr.mxu0 0.0
    %332 = vmatpush1.xpose.msra.mxu0 0.0
    %333 = vmatprep.subr.mxu0 0.0
    %334 = vmatpush1.xpose.msra.mxu0 0.0
    %335 = vmatprep.subr.mxu0 0.0
    %336 = vmatpush1.xpose.msra.mxu0 0.0
    %337 = vmatprep.subr.mxu0 0.0
    %338 = vmatpush1.xpose.msra.mxu0 0.0
    %339 = vmatprep.mubr.f32.mxu0 0.0
    %340 = vmatmul.mubr.f32.gmra.mrb[0].mxu0 %v271
    %v341 = vpop.f32.mrb[0].mxu0
    %v342 = vadd.f32 %v186, %v341
    %v343 = vpop.f32.mrb[0].mxu0
    %344 = vdwg.mxu0
    %v345 = vsel %vm193, %v265, -inf
    %346 = vmax.xlane.f32.xlu0 %v345
    %v347 = vpop.xlane.xlu0 %346
    %v348 = vsel %vm193, %v342, -inf
    %349 = vmax.xlane.f32.xlu0 %v348
    %v350 = vpop.xlane.xlu0 %349
    %v351 = vsub.f32 %v265, %v347
    %v352 = vsub.f32 %v342, %v350
    %v353 = vmul.f32 %v351, 1.442695
    %v354 = vpow.pop %v353
    %v355 = vmul.f32 %v352, 1.442695
    %v356 = vpow.pop %v355
    %v357 = vsel %vm193, %v354, 0.0
    %358 = vadd.xlane.f32.xlu0 %v357
    %v359 = vpop.xlane.xlu0 %358
    %v360 = vsel %vm193, %v356, 0.0
    %361 = vadd.xlane.f32.xlu0 %v360
    %v362 = vpop.xlane.xlu0 %361
    %v363 = vrcp.pop %v359
    %v364 = vrcp.pop %v362
    %v365 = vmul.f32 %v354, %v363
    %v366 = vmul.f32 %v356, %v364
    %367 = vrot.lane.b32.xlu0 %v178, 64
    %v368 = vpop.permute.xlu0 %367
    %v371 = vsel %vm193, %v365, 0
    %373 = vmatprep.subr.mxu0 0.0
    %374 = vmatpush1.msra.mxu0 %v368
    %375 = vmatprep.subr.mxu0 0.0
    %376 = vmatpush1.msra.mxu0 0.0
    %377 = vmatprep.subr.mxu0 0.0
    %378 = vmatpush1.msra.mxu0 0.0
    %379 = vmatprep.subr.mxu0 0.0
    %380 = vmatpush1.msra.mxu0 0.0
    %381 = vmatprep.subr.mxu0 0.0
    %382 = vmatpush1.msra.mxu0 0.0
    %383 = vmatprep.subr.mxu0 0.0
    %384 = vmatpush1.msra.mxu0 0.0
    %385 = vmatprep.subr.mxu0 0.0
    %386 = vmatpush1.msra.mxu0 0.0
    %387 = vmatprep.subr.mxu0 0.0
    %388 = vmatpush1.msra.mxu0 0.0
    %389 = vmatprep.subr.mxu0 0.0
    %390 = vmatpush1.msra.mxu0 0.0
    %391 = vmatprep.subr.mxu0 0.0
    %392 = vmatpush1.msra.mxu0 0.0
    %393 = vmatprep.subr.mxu0 0.0
    %394 = vmatpush1.msra.mxu0 0.0
    %395 = vmatprep.subr.mxu0 0.0
    %396 = vmatpush1.msra.mxu0 0.0
    %397 = vmatprep.subr.mxu0 0.0
    %398 = vmatpush1.msra.mxu0 0.0
    %399 = vmatprep.subr.mxu0 0.0
    %400 = vmatpush1.msra.mxu0 0.0
    %401 = vmatprep.subr.mxu0 0.0
    %402 = vmatpush1.msra.mxu0 0.0
    %403 = vmatprep.subr.mxu0 0.0
    %404 = vmatpush1.msra.mxu0 0.0
    %405 = vmatprep.subr.mxu0 0.0
    %406 = vmatpush1.msra.mxu0 0.0
    %407 = vmatprep.subr.mxu0 0.0
    %408 = vmatpush1.msra.mxu0 0.0
    %409 = vmatprep.subr.mxu0 0.0
    %410 = vmatpush1.msra.mxu0 0.0
    %411 = vmatprep.subr.mxu0 0.0
    %412 = vmatpush1.msra.mxu0 0.0
    %413 = vmatprep.subr.mxu0 0.0
    %414 = vmatpush1.msra.mxu0 0.0
    %415 = vmatprep.subr.mxu0 0.0
    %416 = vmatpush1.msra.mxu0 0.0
    %417 = vmatprep.subr.mxu0 0.0
    %418 = vmatpush1.msra.mxu0 0.0
    %419 = vmatprep.subr.mxu0 0.0
    %420 = vmatpush1.msra.mxu0 0.0
    %421 = vmatprep.subr.mxu0 0.0
    %422 = vmatpush1.msra.mxu0 0.0
    %423 = vmatprep.subr.mxu0 0.0
    %424 = vmatpush1.msra.mxu0 0.0
    %425 = vmatprep.subr.mxu0 0.0
    %426 = vmatpush1.msra.mxu0 0.0
    %427 = vmatprep.subr.mxu0 0.0
    %428 = vmatpush1.msra.mxu0 0.0
    %429 = vmatprep.subr.mxu0 0.0
    %430 = vmatpush1.msra.mxu0 0.0
    %431 = vmatprep.subr.mxu0 0.0
    %432 = vmatpush1.msra.mxu0 0.0
    %433 = vmatprep.subr.mxu0 0.0
    %434 = vmatpush1.msra.mxu0 0.0
    %435 = vmatprep.subr.mxu0 0.0
    %436 = vmatpush1.msra.mxu0 0.0
    %437 = vmatprep.mubr.f32.mxu0 0.0
    %438 = vmatmul.mubr.f32.gmra.mrb[0].mxu0 %v371
    %v439 = vpop.f32.mrb[0].mxu0
    %v440 = vadd.f32 0.0, %v439
    %v441 = vpop.f32.mrb[0].mxu0
    %442 = vdwg.mxu0
    %443 = vrot.lane.b32.xlu0 %v183, 64
    %v444 = vpop.permute.xlu0 %443
    %v447 = vsel %vm193, %v366, 0
    %449 = vmatprep.subr.mxu0 0.0
    %450 = vmatpush1.msra.mxu0 %v444
    %451 = vmatprep.subr.mxu0 0.0
    %452 = vmatpush1.msra.mxu0 0.0
    %453 = vmatprep.subr.mxu0 0.0
    %454 = vmatpush1.msra.mxu0 0.0
    %455 = vmatprep.subr.mxu0 0.0
    %456 = vmatpush1.msra.mxu0 0.0
    %457 = vmatprep.subr.mxu0 0.0
    %458 = vmatpush1.msra.mxu0 0.0
    %459 = vmatprep.subr.mxu0 0.0
    %460 = vmatpush1.msra.mxu0 0.0
    %461 = vmatprep.subr.mxu0 0.0
    %462 = vmatpush1.msra.mxu0 0.0
    %463 = vmatprep.subr.mxu0 0.0
    %464 = vmatpush1.msra.mxu0 0.0
    %465 = vmatprep.subr.mxu0 0.0
    %466 = vmatpush1.msra.mxu0 0.0
    %467 = vmatprep.subr.mxu0 0.0
    %468 = vmatpush1.msra.mxu0 0.0
    %469 = vmatprep.subr.mxu0 0.0
    %470 = vmatpush1.msra.mxu0 0.0
    %471 = vmatprep.subr.mxu0 0.0
    %472 = vmatpush1.msra.mxu0 0.0
    %473 = vmatprep.subr.mxu0 0.0
    %474 = vmatpush1.msra.mxu0 0.0
    %475 = vmatprep.subr.mxu0 0.0
    %476 = vmatpush1.msra.mxu0 0.0
    %477 = vmatprep.subr.mxu0 0.0
    %478 = vmatpush1.msra.mxu0 0.0
    %479 = vmatprep.subr.mxu0 0.0
    %480 = vmatpush1.msra.mxu0 0.0
    %481 = vmatprep.subr.mxu0 0.0
    %482 = vmatpush1.msra.mxu0 0.0
    %483 = vmatprep.subr.mxu0 0.0
    %484 = vmatpush1.msra.mxu0 0.0
    %485 = vmatprep.subr.mxu0 0.0
    %486 = vmatpush1.msra.mxu0 0.0
    %487 = vmatprep.subr.mxu0 0.0
    %488 = vmatpush1.msra.mxu0 0.0
    %489 = vmatprep.subr.mxu0 0.0
    %490 = vmatpush1.msra.mxu0 0.0
    %491 = vmatprep.subr.mxu0 0.0
    %492 = vmatpush1.msra.mxu0 0.0
    %493 = vmatprep.subr.mxu0 0.0
    %494 = vmatpush1.msra.mxu0 0.0
    %495 = vmatprep.subr.mxu0 0.0
    %496 = vmatpush1.msra.mxu0 0.0
    %497 = vmatprep.subr.mxu0 0.0
    %498 = vmatpush1.msra.mxu0 0.0
    %499 = vmatprep.subr.mxu0 0.0
    %500 = vmatpush1.msra.mxu0 0.0
    %501 = vmatprep.subr.mxu0 0.0
    %502 = vmatpush1.msra.mxu0 0.0
    %503 = vmatprep.subr.mxu0 0.0
    %504 = vmatpush1.msra.mxu0 0.0
    %505 = vmatprep.subr.mxu0 0.0
    %506 = vmatpush1.msra.mxu0 0.0
    %507 = vmatprep.subr.mxu0 0.0
    %508 = vmatpush1.msra.mxu0 0.0
    %509 = vmatprep.subr.mxu0 0.0
    %510 = vmatpush1.msra.mxu0 0.0
    %511 = vmatprep.subr.mxu0 0.0
    %512 = vmatpush1.msra.mxu0 0.0
    %513 = vmatprep.mubr.f32.mxu0 0.0
    %514 = vmatmul.mubr.f32.gmra.mrb[0].mxu0 %v447
    %v515 = vpop.f32.mrb[0].mxu0
    %v516 = vadd.f32 0.0, %v515
    %v517 = vpop.f32.mrb[0].mxu0
    %518 = vdwg.mxu0
    %v519 = vld [vmem:[%s3] sm:$0xff]
    %520 = vrot.lane.b32.xlu0 %v178, 120
    %v521 = vpop.permute.xlu0 %520
    %522 = vrot.lane.b32.xlu0 %v178, 88
    %v523 = vpop.permute.xlu0 %522
    %v524 = vsel %vm193, %v521, 0
    %v526 = vsel %vm193, %v523, 0
    %528 = vmatprep.subr.mxu0 0.0
    %529 = vmatpush1.xpose.msra.mxu0 %v526
    %530 = vmatprep.subr.mxu0 0.0
    %531 = vmatpush1.xpose.msra.mxu0 0.0
    %532 = vmatprep.subr.mxu0 0.0
    %533 = vmatpush1.xpose.msra.mxu0 0.0
    %534 = vmatprep.subr.mxu0 0.0
    %535 = vmatpush1.xpose.msra.mxu0 0.0
    %536 = vmatprep.subr.mxu0 0.0
    %537 = vmatpush1.xpose.msra.mxu0 0.0
    %538 = vmatprep.subr.mxu0 0.0
    %539 = vmatpush1.xpose.msra.mxu0 0.0
    %540 = vmatprep.subr.mxu0 0.0
    %541 = vmatpush1.xpose.msra.mxu0 0.0
    %542 = vmatprep.subr.mxu0 0.0
    %543 = vmatpush1.xpose.msra.mxu0 0.0
    %544 = vmatprep.subr.mxu0 0.0
    %545 = vmatpush1.xpose.msra.mxu0 0.0
    %546 = vmatprep.subr.mxu0 0.0
    %547 = vmatpush1.xpose.msra.mxu0 0.0
    %548 = vmatprep.subr.mxu0 0.0
    %549 = vmatpush1.xpose.msra.mxu0 0.0
    %550 = vmatprep.subr.mxu0 0.0
    %551 = vmatpush1.xpose.msra.mxu0 0.0
    %552 = vmatprep.subr.mxu0 0.0
    %553 = vmatpush1.xpose.msra.mxu0 0.0
    %554 = vmatprep.subr.mxu0 0.0
    %555 = vmatpush1.xpose.msra.mxu0 0.0
    %556 = vmatprep.subr.mxu0 0.0
    %557 = vmatpush1.xpose.msra.mxu0 0.0
    %558 = vmatprep.subr.mxu0 0.0
    %559 = vmatpush1.xpose.msra.mxu0 0.0
    %560 = vmatprep.subr.mxu0 0.0
    %561 = vmatpush1.xpose.msra.mxu0 0.0
    %562 = vmatprep.subr.mxu0 0.0
    %563 = vmatpush1.xpose.msra.mxu0 0.0
    %564 = vmatprep.subr.mxu0 0.0
    %565 = vmatpush1.xpose.msra.mxu0 0.0
    %566 = vmatprep.subr.mxu0 0.0
    %567 = vmatpush1.xpose.msra.mxu0 0.0
    %568 = vmatprep.subr.mxu0 0.0
    %569 = vmatpush1.xpose.msra.mxu0 0.0
    %570 = vmatprep.subr.mxu0 0.0
    %571 = vmatpush1.xpose.msra.mxu0 0.0
    %572 = vmatprep.subr.mxu0 0.0
    %573 = vmatpush1.xpose.msra.mxu0 0.0
    %574 = vmatprep.subr.mxu0 0.0
    %575 = vmatpush1.xpose.msra.mxu0 0.0
    %576 = vmatprep.subr.mxu0 0.0
    %577 = vmatpush1.xpose.msra.mxu0 0.0
    %578 = vmatprep.subr.mxu0 0.0
    %579 = vmatpush1.xpose.msra.mxu0 0.0
    %580 = vmatprep.subr.mxu0 0.0
    %581 = vmatpush1.xpose.msra.mxu0 0.0
    %582 = vmatprep.subr.mxu0 0.0
    %583 = vmatpush1.xpose.msra.mxu0 0.0
    %584 = vmatprep.subr.mxu0 0.0
    %585 = vmatpush1.xpose.msra.mxu0 0.0
    %586 = vmatprep.subr.mxu0 0.0
    %587 = vmatpush1.xpose.msra.mxu0 0.0
    %588 = vmatprep.subr.mxu0 0.0
    %589 = vmatpush1.xpose.msra.mxu0 0.0
    %590 = vmatprep.subr.mxu0 0.0
    %591 = vmatpush1.xpose.msra.mxu0 0.0
    %592 = vmatprep.mubr.f32.mxu0 0.0
    %593 = vmatmul.mubr.f32.gmra.mrb[0].mxu0 %v524
    %v594 = vpop.f32.mrb[0].mxu0
    %v595 = vadd.f32 %v187, %v594
    %v596 = vpop.f32.mrb[0].mxu0
    %597 = vdwg.mxu0
    %598 = vrot.lane.b32.xlu0 %v183, 120
    %v599 = vpop.permute.xlu0 %598
    %600 = vrot.lane.b32.xlu0 %v183, 88
    %v601 = vpop.permute.xlu0 %600
    %v602 = vsel %vm193, %v599, 0
    %v604 = vsel %vm193, %v601, 0
    %606 = vmatprep.subr.mxu0 0.0
    %607 = vmatpush1.xpose.msra.mxu0 %v604
    %608 = vmatprep.subr.mxu0 0.0
    %609 = vmatpush1.xpose.msra.mxu0 0.0
    %610 = vmatprep.subr.mxu0 0.0
    %611 = vmatpush1.xpose.msra.mxu0 0.0
    %612 = vmatprep.subr.mxu0 0.0
    %613 = vmatpush1.xpose.msra.mxu0 0.0
    %614 = vmatprep.subr.mxu0 0.0
    %615 = vmatpush1.xpose.msra.mxu0 0.0
    %616 = vmatprep.subr.mxu0 0.0
    %617 = vmatpush1.xpose.msra.mxu0 0.0
    %618 = vmatprep.subr.mxu0 0.0
    %619 = vmatpush1.xpose.msra.mxu0 0.0
    %620 = vmatprep.subr.mxu0 0.0
    %621 = vmatpush1.xpose.msra.mxu0 0.0
    %622 = vmatprep.subr.mxu0 0.0
    %623 = vmatpush1.xpose.msra.mxu0 0.0
    %624 = vmatprep.subr.mxu0 0.0
    %625 = vmatpush1.xpose.msra.mxu0 0.0
    %626 = vmatprep.subr.mxu0 0.0
    %627 = vmatpush1.xpose.msra.mxu0 0.0
    %628 = vmatprep.subr.mxu0 0.0
    %629 = vmatpush1.xpose.msra.mxu0 0.0
    %630 = vmatprep.subr.mxu0 0.0
    %631 = vmatpush1.xpose.msra.mxu0 0.0
    %632 = vmatprep.subr.mxu0 0.0
    %633 = vmatpush1.xpose.msra.mxu0 0.0
    %634 = vmatprep.subr.mxu0 0.0
    %635 = vmatpush1.xpose.msra.mxu0 0.0
    %636 = vmatprep.subr.mxu0 0.0
    %637 = vmatpush1.xpose.msra.mxu0 0.0
    %638 = vmatprep.subr.mxu0 0.0
    %639 = vmatpush1.xpose.msra.mxu0 0.0
    %640 = vmatprep.subr.mxu0 0.0
    %641 = vmatpush1.xpose.msra.mxu0 0.0
    %642 = vmatprep.subr.mxu0 0.0
    %643 = vmatpush1.xpose.msra.mxu0 0.0
    %644 = vmatprep.subr.mxu0 0.0
    %645 = vmatpush1.xpose.msra.mxu0 0.0
    %646 = vmatprep.subr.mxu0 0.0
    %647 = vmatpush1.xpose.msra.mxu0 0.0
    %648 = vmatprep.subr.mxu0 0.0
    %649 = vmatpush1.xpose.msra.mxu0 0.0
    %650 = vmatprep.subr.mxu0 0.0
    %651 = vmatpush1.xpose.msra.mxu0 0.0
    %652 = vmatprep.subr.mxu0 0.0
    %653 = vmatpush1.xpose.msra.mxu0 0.0
    %654 = vmatprep.subr.mxu0 0.0
    %655 = vmatpush1.xpose.msra.mxu0 0.0
    %656 = vmatprep.subr.mxu0 0.0
    %657 = vmatpush1.xpose.msra.mxu0 0.0
    %658 = vmatprep.subr.mxu0 0.0
    %659 = vmatpush1.xpose.msra.mxu0 0.0
    %660 = vmatprep.subr.mxu0 0.0
    %661 = vmatpush1.xpose.msra.mxu0 0.0
    %662 = vmatprep.subr.mxu0 0.0
    %663 = vmatpush1.xpose.msra.mxu0 0.0
    %664 = vmatprep.subr.mxu0 0.0
    %665 = vmatpush1.xpose.msra.mxu0 0.0
    %666 = vmatprep.subr.mxu0 0.0
    %667 = vmatpush1.xpose.msra.mxu0 0.0
    %668 = vmatprep.subr.mxu0 0.0
    %669 = vmatpush1.xpose.msra.mxu0 0.0
    %670 = vmatprep.mubr.f32.mxu0 0.0
    %671 = vmatmul.mubr.f32.gmra.mrb[0].mxu0 %v602
    %v672 = vpop.f32.mrb[0].mxu0
    %v673 = vadd.f32 %v187, %v672
    %v674 = vpop.f32.mrb[0].mxu0
    %675 = vdwg.mxu0
    %v676 = vsel %vm193, %v595, -inf
    %677 = vmax.xlane.f32.xlu0 %v676
    %v678 = vpop.xlane.xlu0 %677
    %v679 = vsel %vm193, %v673, -inf
    %680 = vmax.xlane.f32.xlu0 %v679
    %v681 = vpop.xlane.xlu0 %680
    %v682 = vsub.f32 %v595, %v678
    %v683 = vsub.f32 %v673, %v681
    %v684 = vmul.f32 %v682, 1.442695
    %v685 = vpow.pop %v684
    %v686 = vmul.f32 %v683, 1.442695
    %v687 = vpow.pop %v686
    %v688 = vsel %vm193, %v685, 0.0
    %689 = vadd.xlane.f32.xlu0 %v688
    %v690 = vpop.xlane.xlu0 %689
    %v691 = vsel %vm193, %v687, 0.0
    %692 = vadd.xlane.f32.xlu0 %v691
    %v693 = vpop.xlane.xlu0 %692
    %v694 = vrcp.pop %v690
    %v695 = vrcp.pop %v693
    %v696 = vmul.f32 %v685, %v694
    %v697 = vmul.f32 %v687, %v695
    %698 = vrot.lane.b32.xlu0 %v178, 56
    %v699 = vpop.permute.xlu0 %698
    %v702 = vsel %vm193, %v696, 0
    %704 = vmatprep.subr.mxu0 0.0
    %705 = vmatpush1.msra.mxu0 %v699
    %706 = vmatprep.subr.mxu0 0.0
    %707 = vmatpush1.msra.mxu0 0.0
    %708 = vmatprep.subr.mxu0 0.0
    %709 = vmatpush1.msra.mxu0 0.0
    %710 = vmatprep.subr.mxu0 0.0
    %711 = vmatpush1.msra.mxu0 0.0
    %712 = vmatprep.subr.mxu0 0.0
    %713 = vmatpush1.msra.mxu0 0.0
    %714 = vmatprep.subr.mxu0 0.0
    %715 = vmatpush1.msra.mxu0 0.0
    %716 = vmatprep.subr.mxu0 0.0
    %717 = vmatpush1.msra.mxu0 0.0
    %718 = vmatprep.subr.mxu0 0.0
    %719 = vmatpush1.msra.mxu0 0.0
    %720 = vmatprep.subr.mxu0 0.0
    %721 = vmatpush1.msra.mxu0 0.0
    %722 = vmatprep.subr.mxu0 0.0
    %723 = vmatpush1.msra.mxu0 0.0
    %724 = vmatprep.subr.mxu0 0.0
    %725 = vmatpush1.msra.mxu0 0.0
    %726 = vmatprep.subr.mxu0 0.0
    %727 = vmatpush1.msra.mxu0 0.0
    %728 = vmatprep.subr.mxu0 0.0
    %729 = vmatpush1.msra.mxu0 0.0
    %730 = vmatprep.subr.mxu0 0.0
    %731 = vmatpush1.msra.mxu0 0.0
    %732 = vmatprep.subr.mxu0 0.0
    %733 = vmatpush1.msra.mxu0 0.0
    %734 = vmatprep.subr.mxu0 0.0
    %735 = vmatpush1.msra.mxu0 0.0
    %736 = vmatprep.subr.mxu0 0.0
    %737 = vmatpush1.msra.mxu0 0.0
    %738 = vmatprep.subr.mxu0 0.0
    %739 = vmatpush1.msra.mxu0 0.0
    %740 = vmatprep.subr.mxu0 0.0
    %741 = vmatpush1.msra.mxu0 0.0
    %742 = vmatprep.subr.mxu0 0.0
    %743 = vmatpush1.msra.mxu0 0.0
    %744 = vmatprep.subr.mxu0 0.0
    %745 = vmatpush1.msra.mxu0 0.0
    %746 = vmatprep.subr.mxu0 0.0
    %747 = vmatpush1.msra.mxu0 0.0
    %748 = vmatprep.subr.mxu0 0.0
    %749 = vmatpush1.msra.mxu0 0.0
    %750 = vmatprep.subr.mxu0 0.0
    %751 = vmatpush1.msra.mxu0 0.0
    %752 = vmatprep.subr.mxu0 0.0
    %753 = vmatpush1.msra.mxu0 0.0
    %754 = vmatprep.subr.mxu0 0.0
    %755 = vmatpush1.msra.mxu0 0.0
    %756 = vmatprep.subr.mxu0 0.0
    %757 = vmatpush1.msra.mxu0 0.0
    %758 = vmatprep.subr.mxu0 0.0
    %759 = vmatpush1.msra.mxu0 0.0
    %760 = vmatprep.subr.mxu0 0.0
    %761 = vmatpush1.msra.mxu0 0.0
    %762 = vmatprep.subr.mxu0 0.0
    %763 = vmatpush1.msra.mxu0 0.0
    %764 = vmatprep.subr.mxu0 0.0
    %765 = vmatpush1.msra.mxu0 0.0
    %766 = vmatprep.subr.mxu0 0.0
    %767 = vmatpush1.msra.mxu0 0.0
    %768 = vmatprep.mubr.f32.mxu0 0.0
    %769 = vmatmul.mubr.f32.gmra.mrb[0].mxu0 %v702
    %v770 = vpop.f32.mrb[0].mxu0
    %v771 = vadd.f32 0.0, %v770
    %v772 = vpop.f32.mrb[0].mxu0
    %773 = vdwg.mxu0
    %774 = vrot.lane.b32.xlu0 %v183, 56
    %v775 = vpop.permute.xlu0 %774
    %v778 = vsel %vm193, %v697, 0
    %780 = vmatprep.subr.mxu0 0.0
    %781 = vmatpush1.msra.mxu0 %v775
    %782 = vmatprep.subr.mxu0 0.0
    %783 = vmatpush1.msra.mxu0 0.0
    %784 = vmatprep.subr.mxu0 0.0
    %785 = vmatpush1.msra.mxu0 0.0
    %786 = vmatprep.subr.mxu0 0.0
    %787 = vmatpush1.msra.mxu0 0.0
    %788 = vmatprep.subr.mxu0 0.0
    %789 = vmatpush1.msra.mxu0 0.0
    %790 = vmatprep.subr.mxu0 0.0
    %791 = vmatpush1.msra.mxu0 0.0
    %792 = vmatprep.subr.mxu0 0.0
    %793 = vmatpush1.msra.mxu0 0.0
    %794 = vmatprep.subr.mxu0 0.0
    %795 = vmatpush1.msra.mxu0 0.0
    %796 = vmatprep.subr.mxu0 0.0
    %797 = vmatpush1.msra.mxu0 0.0
    %798 = vmatprep.subr.mxu0 0.0
    %799 = vmatpush1.msra.mxu0 0.0
    %800 = vmatprep.subr.mxu0 0.0
    %801 = vmatpush1.msra.mxu0 0.0
    %802 = vmatprep.subr.mxu0 0.0
    %803 = vmatpush1.msra.mxu0 0.0
    %804 = vmatprep.subr.mxu0 0.0
    %805 = vmatpush1.msra.mxu0 0.0
    %806 = vmatprep.subr.mxu0 0.0
    %807 = vmatpush1.msra.mxu0 0.0
    %808 = vmatprep.subr.mxu0 0.0
    %809 = vmatpush1.msra.mxu0 0.0
    %810 = vmatprep.subr.mxu0 0.0
    %811 = vmatpush1.msra.mxu0 0.0
    %812 = vmatprep.subr.mxu0 0.0
    %813 = vmatpush1.msra.mxu0 0.0
    %814 = vmatprep.subr.mxu0 0.0
    %815 = vmatpush1.msra.mxu0 0.0
    %816 = vmatprep.subr.mxu0 0.0
    %817 = vmatpush1.msra.mxu0 0.0
    %818 = vmatprep.subr.mxu0 0.0
    %819 = vmatpush1.msra.mxu0 0.0
    %820 = vmatprep.subr.mxu0 0.0
    %821 = vmatpush1.msra.mxu0 0.0
    %822 = vmatprep.subr.mxu0 0.0
    %823 = vmatpush1.msra.mxu0 0.0
    %824 = vmatprep.subr.mxu0 0.0
    %825 = vmatpush1.msra.mxu0 0.0
    %826 = vmatprep.subr.mxu0 0.0
    %827 = vmatpush1.msra.mxu0 0.0
    %828 = vmatprep.subr.mxu0 0.0
    %829 = vmatpush1.msra.mxu0 0.0
    %830 = vmatprep.subr.mxu0 0.0
    %831 = vmatpush1.msra.mxu0 0.0
    %832 = vmatprep.subr.mxu0 0.0
    %833 = vmatpush1.msra.mxu0 0.0
    %834 = vmatprep.subr.mxu0 0.0
    %835 = vmatpush1.msra.mxu0 0.0
    %836 = vmatprep.subr.mxu0 0.0
    %837 = vmatpush1.msra.mxu0 0.0
    %838 = vmatprep.subr.mxu0 0.0
    %839 = vmatpush1.msra.mxu0 0.0
    %840 = vmatprep.subr.mxu0 0.0
    %841 = vmatpush1.msra.mxu0 0.0
    %842 = vmatprep.subr.mxu0 0.0
    %843 = vmatpush1.msra.mxu0 0.0
    %844 = vmatprep.mubr.f32.mxu0 0.0
    %845 = vmatmul.mubr.f32.gmra.mrb[0].mxu0 %v778
    %v846 = vpop.f32.mrb[0].mxu0
    %v847 = vadd.f32 0.0, %v846
    %v848 = vpop.f32.mrb[0].mxu0
    %849 = vdwg.mxu0
    %v850 = vld [vmem:[%s3 + $0x8] sm:$0xff]
    %v852 = vsel %vm193, %v771, 0
    %v855 = vsel %vm193, %v847, 0
    %857 = vmatprep.subr.mxu0 0.0
    %858 = vmatpush1.msra.mxu0 %v850
    %859 = vmatprep.subr.mxu0 0.0
    %860 = vmatpush1.msra.mxu0 0.0
    %861 = vmatprep.subr.mxu0 0.0
    %862 = vmatpush1.msra.mxu0 0.0
    %863 = vmatprep.subr.mxu0 0.0
    %864 = vmatpush1.msra.mxu0 0.0
    %865 = vmatprep.subr.mxu0 0.0
    %866 = vmatpush1.msra.mxu0 0.0
    %867 = vmatprep.subr.mxu0 0.0
    %868 = vmatpush1.msra.mxu0 0.0
    %869 = vmatprep.subr.mxu0 0.0
    %870 = vmatpush1.msra.mxu0 0.0
    %871 = vmatprep.subr.mxu0 0.0
    %872 = vmatpush1.msra.mxu0 0.0
    %873 = vmatprep.subr.mxu0 0.0
    %874 = vmatpush1.msra.mxu0 0.0
    %875 = vmatprep.subr.mxu0 0.0
    %876 = vmatpush1.msra.mxu0 0.0
    %877 = vmatprep.subr.mxu0 0.0
    %878 = vmatpush1.msra.mxu0 0.0
    %879 = vmatprep.subr.mxu0 0.0
    %880 = vmatpush1.msra.mxu0 0.0
    %881 = vmatprep.subr.mxu0 0.0
    %882 = vmatpush1.msra.mxu0 0.0
    %883 = vmatprep.subr.mxu0 0.0
    %884 = vmatpush1.msra.mxu0 0.0
    %885 = vmatprep.subr.mxu0 0.0
    %886 = vmatpush1.msra.mxu0 0.0
    %887 = vmatprep.subr.mxu0 0.0
    %888 = vmatpush1.msra.mxu0 0.0
    %889 = vmatprep.subr.mxu0 0.0
    %890 = vmatpush1.msra.mxu0 0.0
    %891 = vmatprep.subr.mxu0 0.0
    %892 = vmatpush1.msra.mxu0 0.0
    %893 = vmatprep.subr.mxu0 0.0
    %894 = vmatpush1.msra.mxu0 0.0
    %895 = vmatprep.subr.mxu0 0.0
    %896 = vmatpush1.msra.mxu0 0.0
    %897 = vmatprep.subr.mxu0 0.0
    %898 = vmatpush1.msra.mxu0 0.0
    %899 = vmatprep.subr.mxu0 0.0
    %900 = vmatpush1.msra.mxu0 0.0
    %901 = vmatprep.subr.mxu0 0.0
    %902 = vmatpush1.msra.mxu0 0.0
    %903 = vmatprep.subr.mxu0 0.0
    %904 = vmatpush1.msra.mxu0 0.0
    %905 = vmatprep.subr.mxu0 0.0
    %906 = vmatpush1.msra.mxu0 0.0
    %907 = vmatprep.subr.mxu0 0.0
    %908 = vmatpush1.msra.mxu0 0.0
    %909 = vmatprep.subr.mxu0 0.0
    %910 = vmatpush1.msra.mxu0 0.0
    %911 = vmatprep.subr.mxu0 0.0
    %912 = vmatpush1.msra.mxu0 0.0
    %913 = vmatprep.subr.mxu0 0.0
    %914 = vmatpush1.msra.mxu0 0.0
    %915 = vmatprep.subr.mxu0 0.0
    %916 = vmatpush1.msra.mxu0 0.0
    %917 = vmatprep.subr.mxu0 0.0
    %918 = vmatpush1.msra.mxu0 0.0
    %919 = vmatprep.subr.mxu0 0.0
    %920 = vmatpush1.msra.mxu0 0.0
    %921 = vmatprep.mubr.f32.mxu0 0.0
    %922 = vmatmul.mubr.f32.gmra.mrb[0].mxu0 %v852
    %v923 = vpop.f32.mrb[0].mxu0
    %v924 = vadd.f32 0.0, %v923
    %v925 = vpop.f32.mrb[0].mxu0
    %926 = vmatprep.mubr.f32.mxu0 0.0
    %927 = vmatmul.mubr.f32.gmra.mrb[0].mxu0 %v855
    %v928 = vpop.f32.mrb[0].mxu0
    %v929 = vadd.f32 0.0, %v928
    %v930 = vpop.f32.mrb[0].mxu0
    %931 = vdwg.mxu0
    %v933 = vsel %vm193, %v440, 0
    %v936 = vsel %vm193, %v516, 0
    %938 = vmatprep.subr.mxu0 0.0
    %939 = vmatpush1.msra.mxu0 %v519
    %940 = vmatprep.subr.mxu0 0.0
    %941 = vmatpush1.msra.mxu0 0.0
    %942 = vmatprep.subr.mxu0 0.0
    %943 = vmatpush1.msra.mxu0 0.0
    %944 = vmatprep.subr.mxu0 0.0
    %945 = vmatpush1.msra.mxu0 0.0
    %946 = vmatprep.subr.mxu0 0.0
    %947 = vmatpush1.msra.mxu0 0.0
    %948 = vmatprep.subr.mxu0 0.0
    %949 = vmatpush1.msra.mxu0 0.0
    %950 = vmatprep.subr.mxu0 0.0
    %951 = vmatpush1.msra.mxu0 0.0
    %952 = vmatprep.subr.mxu0 0.0
    %953 = vmatpush1.msra.mxu0 0.0
    %954 = vmatprep.subr.mxu0 0.0
    %955 = vmatpush1.msra.mxu0 0.0
    %956 = vmatprep.subr.mxu0 0.0
    %957 = vmatpush1.msra.mxu0 0.0
    %958 = vmatprep.subr.mxu0 0.0
    %959 = vmatpush1.msra.mxu0 0.0
    %960 = vmatprep.subr.mxu0 0.0
    %961 = vmatpush1.msra.mxu0 0.0
    %962 = vmatprep.subr.mxu0 0.0
    %963 = vmatpush1.msra.mxu0 0.0
    %964 = vmatprep.subr.mxu0 0.0
    %965 = vmatpush1.msra.mxu0 0.0
    %966 = vmatprep.subr.mxu0 0.0
    %967 = vmatpush1.msra.mxu0 0.0
    %968 = vmatprep.subr.mxu0 0.0
    %969 = vmatpush1.msra.mxu0 0.0
    %970 = vmatprep.subr.mxu0 0.0
    %971 = vmatpush1.msra.mxu0 0.0
    %972 = vmatprep.subr.mxu0 0.0
    %973 = vmatpush1.msra.mxu0 0.0
    %974 = vmatprep.subr.mxu0 0.0
    %975 = vmatpush1.msra.mxu0 0.0
    %976 = vmatprep.subr.mxu0 0.0
    %977 = vmatpush1.msra.mxu0 0.0
    %978 = vmatprep.subr.mxu0 0.0
    %979 = vmatpush1.msra.mxu0 0.0
    %980 = vmatprep.subr.mxu0 0.0
    %981 = vmatpush1.msra.mxu0 0.0
    %982 = vmatprep.subr.mxu0 0.0
    %983 = vmatpush1.msra.mxu0 0.0
    %984 = vmatprep.subr.mxu0 0.0
    %985 = vmatpush1.msra.mxu0 0.0
    %986 = vmatprep.subr.mxu0 0.0
    %987 = vmatpush1.msra.mxu0 0.0
    %988 = vmatprep.subr.mxu0 0.0
    %989 = vmatpush1.msra.mxu0 0.0
    %990 = vmatprep.subr.mxu0 0.0
    %991 = vmatpush1.msra.mxu0 0.0
    %992 = vmatprep.subr.mxu0 0.0
    %993 = vmatpush1.msra.mxu0 0.0
    %994 = vmatprep.subr.mxu0 0.0
    %995 = vmatpush1.msra.mxu0 0.0
    %996 = vmatprep.subr.mxu0 0.0
    %997 = vmatpush1.msra.mxu0 0.0
    %998 = vmatprep.subr.mxu0 0.0
    %999 = vmatpush1.msra.mxu0 0.0
    %1000 = vmatprep.subr.mxu0 0.0
    %1001 = vmatpush1.msra.mxu0 0.0
    %1002 = vmatprep.mubr.f32.mxu0 0.0
    %1003 = vmatmul.mubr.f32.gmra.mrb[0].mxu0 %v933
    %v1004 = vpop.f32.mrb[0].mxu0
    %v1005 = vadd.f32 %v924, %v1004
    %v1006 = vpop.f32.mrb[0].mxu0
    %1007 = vmatprep.mubr.f32.mxu0 0.0
    %1008 = vmatmul.mubr.f32.gmra.mrb[0].mxu0 %v936
    %v1009 = vpop.f32.mrb[0].mxu0
    %v1010 = vadd.f32 %v929, %v1009
    %v1011 = vpop.f32.mrb[0].mxu0
    %1012 = vdwg.mxu0
    %1013 = vrot.lane.b32.xlu0 %v178, 112
    %v1014 = vpop.permute.xlu0 %1013
    %1015 = vrot.lane.b32.xlu0 %v178, 80
    %v1016 = vpop.permute.xlu0 %1015
    %v1017 = vsel %vm193, %v1014, 0
    %v1019 = vsel %vm193, %v1016, 0
    %1021 = vmatprep.subr.mxu0 0.0
    %1022 = vmatpush1.xpose.msra.mxu0 %v1019
    %1023 = vmatprep.subr.mxu0 0.0
    %1024 = vmatpush1.xpose.msra.mxu0 0.0
    %1025 = vmatprep.subr.mxu0 0.0
    %1026 = vmatpush1.xpose.msra.mxu0 0.0
    %1027 = vmatprep.subr.mxu0 0.0
    %1028 = vmatpush1.xpose.msra.mxu0 0.0
    %1029 = vmatprep.subr.mxu0 0.0
    %1030 = vmatpush1.xpose.msra.mxu0 0.0
    %1031 = vmatprep.subr.mxu0 0.0
    %1032 = vmatpush1.xpose.msra.mxu0 0.0
    %1033 = vmatprep.subr.mxu0 0.0
    %1034 = vmatpush1.xpose.msra.mxu0 0.0
    %1035 = vmatprep.subr.mxu0 0.0
    %1036 = vmatpush1.xpose.msra.mxu0 0.0
    %1037 = vmatprep.subr.mxu0 0.0
    %1038 = vmatpush1.xpose.msra.mxu0 0.0
    %1039 = vmatprep.subr.mxu0 0.0
    %1040 = vmatpush1.xpose.msra.mxu0 0.0
    %1041 = vmatprep.subr.mxu0 0.0
    %1042 = vmatpush1.xpose.msra.mxu0 0.0
    %1043 = vmatprep.subr.mxu0 0.0
    %1044 = vmatpush1.xpose.msra.mxu0 0.0
    %1045 = vmatprep.subr.mxu0 0.0
    %1046 = vmatpush1.xpose.msra.mxu0 0.0
    %1047 = vmatprep.subr.mxu0 0.0
    %1048 = vmatpush1.xpose.msra.mxu0 0.0
    %1049 = vmatprep.subr.mxu0 0.0
    %1050 = vmatpush1.xpose.msra.mxu0 0.0
    %1051 = vmatprep.subr.mxu0 0.0
    %1052 = vmatpush1.xpose.msra.mxu0 0.0
    %1053 = vmatprep.subr.mxu0 0.0
    %1054 = vmatpush1.xpose.msra.mxu0 0.0
    %1055 = vmatprep.subr.mxu0 0.0
    %1056 = vmatpush1.xpose.msra.mxu0 0.0
    %1057 = vmatprep.subr.mxu0 0.0
    %1058 = vmatpush1.xpose.msra.mxu0 0.0
    %1059 = vmatprep.subr.mxu0 0.0
    %1060 = vmatpush1.xpose.msra.mxu0 0.0
    %1061 = vmatprep.subr.mxu0 0.0
    %1062 = vmatpush1.xpose.msra.mxu0 0.0
    %1063 = vmatprep.subr.mxu0 0.0
    %1064 = vmatpush1.xpose.msra.mxu0 0.0
    %1065 = vmatprep.subr.mxu0 0.0
    %1066 = vmatpush1.xpose.msra.mxu0 0.0
    %1067 = vmatprep.subr.mxu0 0.0
    %1068 = vmatpush1.xpose.msra.mxu0 0.0
    %1069 = vmatprep.subr.mxu0 0.0
    %1070 = vmatpush1.xpose.msra.mxu0 0.0
    %1071 = vmatprep.subr.mxu0 0.0
    %1072 = vmatpush1.xpose.msra.mxu0 0.0
    %1073 = vmatprep.subr.mxu0 0.0
    %1074 = vmatpush1.xpose.msra.mxu0 0.0
    %1075 = vmatprep.subr.mxu0 0.0
    %1076 = vmatpush1.xpose.msra.mxu0 0.0
    %1077 = vmatprep.subr.mxu0 0.0
    %1078 = vmatpush1.xpose.msra.mxu0 0.0
    %1079 = vmatprep.subr.mxu0 0.0
    %1080 = vmatpush1.xpose.msra.mxu0 0.0
    %1081 = vmatprep.subr.mxu0 0.0
    %1082 = vmatpush1.xpose.msra.mxu0 0.0
    %1083 = vmatprep.subr.mxu0 0.0
    %1084 = vmatpush1.xpose.msra.mxu0 0.0
    %1085 = vmatprep.mubr.f32.mxu0 0.0
    %1086 = vmatmul.mubr.f32.gmra.mrb[0].mxu0 %v1017
    %v1087 = vpop.f32.mrb[0].mxu0
    %v1088 = vadd.f32 %v188, %v1087
    %v1089 = vpop.f32.mrb[0].mxu0
    %1090 = vdwg.mxu0
    %1091 = vrot.lane.b32.xlu0 %v183, 112
    %v1092 = vpop.permute.xlu0 %1091
    %1093 = vrot.lane.b32.xlu0 %v183, 80
    %v1094 = vpop.permute.xlu0 %1093
    %v1095 = vsel %vm193, %v1092, 0
    %v1097 = vsel %vm193, %v1094, 0
    %1099 = vmatprep.subr.mxu0 0.0
    %1100 = vmatpush1.xpose.msra.mxu0 %v1097
    %1101 = vmatprep.subr.mxu0 0.0
    %1102 = vmatpush1.xpose.msra.mxu0 0.0
    %1103 = vmatprep.subr.mxu0 0.0
    %1104 = vmatpush1.xpose.msra.mxu0 0.0
    %1105 = vmatprep.subr.mxu0 0.0
    %1106 = vmatpush1.xpose.msra.mxu0 0.0
    %1107 = vmatprep.subr.mxu0 0.0
    %1108 = vmatpush1.xpose.msra.mxu0 0.0
    %1109 = vmatprep.subr.mxu0 0.0
    %1110 = vmatpush1.xpose.msra.mxu0 0.0
    %1111 = vmatprep.subr.mxu0 0.0
    %1112 = vmatpush1.xpose.msra.mxu0 0.0
    %1113 = vmatprep.subr.mxu0 0.0
    %1114 = vmatpush1.xpose.msra.mxu0 0.0
    %1115 = vmatprep.subr.mxu0 0.0
    %1116 = vmatpush1.xpose.msra.mxu0 0.0
    %1117 = vmatprep.subr.mxu0 0.0
    %1118 = vmatpush1.xpose.msra.mxu0 0.0
    %1119 = vmatprep.subr.mxu0 0.0
    %1120 = vmatpush1.xpose.msra.mxu0 0.0
    %1121 = vmatprep.subr.mxu0 0.0
    %1122 = vmatpush1.xpose.msra.mxu0 0.0
    %1123 = vmatprep.subr.mxu0 0.0
    %1124 = vmatpush1.xpose.msra.mxu0 0.0
    %1125 = vmatprep.subr.mxu0 0.0
    %1126 = vmatpush1.xpose.msra.mxu0 0.0
    %1127 = vmatprep.subr.mxu0 0.0
    %1128 = vmatpush1.xpose.msra.mxu0 0.0
    %1129 = vmatprep.subr.mxu0 0.0
    %1130 = vmatpush1.xpose.msra.mxu0 0.0
    %1131 = vmatprep.subr.mxu0 0.0
    %1132 = vmatpush1.xpose.msra.mxu0 0.0
    %1133 = vmatprep.subr.mxu0 0.0
    %1134 = vmatpush1.xpose.msra.mxu0 0.0
    %1135 = vmatprep.subr.mxu0 0.0
    %1136 = vmatpush1.xpose.msra.mxu0 0.0
    %1137 = vmatprep.subr.mxu0 0.0
    %1138 = vmatpush1.xpose.msra.mxu0 0.0
    %1139 = vmatprep.subr.mxu0 0.0
    %1140 = vmatpush1.xpose.msra.mxu0 0.0
    %1141 = vmatprep.subr.mxu0 0.0
    %1142 = vmatpush1.xpose.msra.mxu0 0.0
    %1143 = vmatprep.subr.mxu0 0.0
    %1144 = vmatpush1.xpose.msra.mxu0 0.0
    %1145 = vmatprep.subr.mxu0 0.0
    %1146 = vmatpush1.xpose.msra.mxu0 0.0
    %1147 = vmatprep.subr.mxu0 0.0
    %1148 = vmatpush1.xpose.msra.mxu0 0.0
    %1149 = vmatprep.subr.mxu0 0.0
    %1150 = vmatpush1.xpose.msra.mxu0 0.0
    %1151 = vmatprep.subr.mxu0 0.0
    %1152 = vmatpush1.xpose.msra.mxu0 0.0
    %1153 = vmatprep.subr.mxu0 0.0
    %1154 = vmatpush1.xpose.msra.mxu0 0.0
    %1155 = vmatprep.subr.mxu0 0.0
    %1156 = vmatpush1.xpose.msra.mxu0 0.0
    %1157 = vmatprep.subr.mxu0 0.0
    %1158 = vmatpush1.xpose.msra.mxu0 0.0
    %1159 = vmatprep.subr.mxu0 0.0
    %1160 = vmatpush1.xpose.msra.mxu0 0.0
    %1161 = vmatprep.subr.mxu0 0.0
    %1162 = vmatpush1.xpose.msra.mxu0 0.0
    %1163 = vmatprep.mubr.f32.mxu0 0.0
    %1164 = vmatmul.mubr.f32.gmra.mrb[0].mxu0 %v1095
    %v1165 = vpop.f32.mrb[0].mxu0
    %v1166 = vadd.f32 %v188, %v1165
    %v1167 = vpop.f32.mrb[0].mxu0
    %1168 = vdwg.mxu0
    %v1169 = vsel %vm193, %v1088, -inf
    %1170 = vmax.xlane.f32.xlu0 %v1169
    %v1171 = vpop.xlane.xlu0 %1170
    %v1172 = vsel %vm193, %v1166, -inf
    %1173 = vmax.xlane.f32.xlu0 %v1172
    %v1174 = vpop.xlane.xlu0 %1173
    %v1175 = vsub.f32 %v1088, %v1171
    %v1176 = vsub.f32 %v1166, %v1174
    %v1177 = vmul.f32 %v1175, 1.442695
    %v1178 = vpow.pop %v1177
    %v1179 = vmul.f32 %v1176, 1.442695
    %v1180 = vpow.pop %v1179
    %v1181 = vsel %vm193, %v1178, 0.0
    %1182 = vadd.xlane.f32.xlu0 %v1181
    %v1183 = vpop.xlane.xlu0 %1182
    %v1184 = vsel %vm193, %v1180, 0.0
    %1185 = vadd.xlane.f32.xlu0 %v1184
    %v1186 = vpop.xlane.xlu0 %1185
    %v1187 = vrcp.pop %v1183
    %v1188 = vrcp.pop %v1186
    %v1189 = vmul.f32 %v1178, %v1187
    %v1190 = vmul.f32 %v1180, %v1188
    %1191 = vrot.lane.b32.xlu0 %v178, 48
    %v1192 = vpop.permute.xlu0 %1191
    %v1195 = vsel %vm193, %v1189, 0
    %1197 = vmatprep.subr.mxu0 0.0
    %1198 = vmatpush1.msra.mxu0 %v1192
    %1199 = vmatprep.subr.mxu0 0.0
    %1200 = vmatpush1.msra.mxu0 0.0
    %1201 = vmatprep.subr.mxu0 0.0
    %1202 = vmatpush1.msra.mxu0 0.0
    %1203 = vmatprep.subr.mxu0 0.0
    %1204 = vmatpush1.msra.mxu0 0.0
    %1205 = vmatprep.subr.mxu0 0.0
    %1206 = vmatpush1.msra.mxu0 0.0
    %1207 = vmatprep.subr.mxu0 0.0
    %1208 = vmatpush1.msra.mxu0 0.0
    %1209 = vmatprep.subr.mxu0 0.0
    %1210 = vmatpush1.msra.mxu0 0.0
    %1211 = vmatprep.subr.mxu0 0.0
    %1212 = vmatpush1.msra.mxu0 0.0
    %1213 = vmatprep.subr.mxu0 0.0
    %1214 = vmatpush1.msra.mxu0 0.0
    %1215 = vmatprep.subr.mxu0 0.0
    %1216 = vmatpush1.msra.mxu0 0.0
    %1217 = vmatprep.subr.mxu0 0.0
    %1218 = vmatpush1.msra.mxu0 0.0
    %1219 = vmatprep.subr.mxu0 0.0
    %1220 = vmatpush1.msra.mxu0 0.0
    %1221 = vmatprep.subr.mxu0 0.0
    %1222 = vmatpush1.msra.mxu0 0.0
    %1223 = vmatprep.subr.mxu0 0.0
    %1224 = vmatpush1.msra.mxu0 0.0
    %1225 = vmatprep.subr.mxu0 0.0
    %1226 = vmatpush1.msra.mxu0 0.0
    %1227 = vmatprep.subr.mxu0 0.0
    %1228 = vmatpush1.msra.mxu0 0.0
    %1229 = vmatprep.subr.mxu0 0.0
    %1230 = vmatpush1.msra.mxu0 0.0
    %1231 = vmatprep.subr.mxu0 0.0
    %1232 = vmatpush1.msra.mxu0 0.0
    %1233 = vmatprep.subr.mxu0 0.0
    %1234 = vmatpush1.msra.mxu0 0.0
    %1235 = vmatprep.subr.mxu0 0.0
    %1236 = vmatpush1.msra.mxu0 0.0
    %1237 = vmatprep.subr.mxu0 0.0
    %1238 = vmatpush1.msra.mxu0 0.0
    %1239 = vmatprep.subr.mxu0 0.0
    %1240 = vmatpush1.msra.mxu0 0.0
    %1241 = vmatprep.subr.mxu0 0.0
    %1242 = vmatpush1.msra.mxu0 0.0
    %1243 = vmatprep.subr.mxu0 0.0
    %1244 = vmatpush1.msra.mxu0 0.0
    %1245 = vmatprep.subr.mxu0 0.0
    %1246 = vmatpush1.msra.mxu0 0.0
    %1247 = vmatprep.subr.mxu0 0.0
    %1248 = vmatpush1.msra.mxu0 0.0
    %1249 = vmatprep.subr.mxu0 0.0
    %1250 = vmatpush1.msra.mxu0 0.0
    %1251 = vmatprep.subr.mxu0 0.0
    %1252 = vmatpush1.msra.mxu0 0.0
    %1253 = vmatprep.subr.mxu0 0.0
    %1254 = vmatpush1.msra.mxu0 0.0
    %1255 = vmatprep.subr.mxu0 0.0
    %1256 = vmatpush1.msra.mxu0 0.0
    %1257 = vmatprep.subr.mxu0 0.0
    %1258 = vmatpush1.msra.mxu0 0.0
    %1259 = vmatprep.subr.mxu0 0.0
    %1260 = vmatpush1.msra.mxu0 0.0
    %1261 = vmatprep.mubr.f32.mxu0 0.0
    %1262 = vmatmul.mubr.f32.gmra.mrb[0].mxu0 %v1195
    %v1263 = vpop.f32.mrb[0].mxu0
    %v1264 = vadd.f32 0.0, %v1263
    %v1265 = vpop.f32.mrb[0].mxu0
    %1266 = vdwg.mxu0
    %1267 = vrot.lane.b32.xlu0 %v183, 48
    %v1268 = vpop.permute.xlu0 %1267
    %v1271 = vsel %vm193, %v1190, 0
    %1273 = vmatprep.subr.mxu0 0.0
    %1274 = vmatpush1.msra.mxu0 %v1268
    %1275 = vmatprep.subr.mxu0 0.0
    %1276 = vmatpush1.msra.mxu0 0.0
    %1277 = vmatprep.subr.mxu0 0.0
    %1278 = vmatpush1.msra.mxu0 0.0
    %1279 = vmatprep.subr.mxu0 0.0
    %1280 = vmatpush1.msra.mxu0 0.0
    %1281 = vmatprep.subr.mxu0 0.0
    %1282 = vmatpush1.msra.mxu0 0.0
    %1283 = vmatprep.subr.mxu0 0.0
    %1284 = vmatpush1.msra.mxu0 0.0
    %1285 = vmatprep.subr.mxu0 0.0
    %1286 = vmatpush1.msra.mxu0 0.0
    %1287 = vmatprep.subr.mxu0 0.0
    %1288 = vmatpush1.msra.mxu0 0.0
    %1289 = vmatprep.subr.mxu0 0.0
    %1290 = vmatpush1.msra.mxu0 0.0
    %1291 = vmatprep.subr.mxu0 0.0
    %1292 = vmatpush1.msra.mxu0 0.0
    %1293 = vmatprep.subr.mxu0 0.0
    %1294 = vmatpush1.msra.mxu0 0.0
    %1295 = vmatprep.subr.mxu0 0.0
    %1296 = vmatpush1.msra.mxu0 0.0
    %1297 = vmatprep.subr.mxu0 0.0
    %1298 = vmatpush1.msra.mxu0 0.0
    %1299 = vmatprep.subr.mxu0 0.0
    %1300 = vmatpush1.msra.mxu0 0.0
    %1301 = vmatprep.subr.mxu0 0.0
    %1302 = vmatpush1.msra.mxu0 0.0
    %1303 = vmatprep.subr.mxu0 0.0
    %1304 = vmatpush1.msra.mxu0 0.0
    %1305 = vmatprep.subr.mxu0 0.0
    %1306 = vmatpush1.msra.mxu0 0.0
    %1307 = vmatprep.subr.mxu0 0.0
    %1308 = vmatpush1.msra.mxu0 0.0
    %1309 = vmatprep.subr.mxu0 0.0
    %1310 = vmatpush1.msra.mxu0 0.0
    %1311 = vmatprep.subr.mxu0 0.0
    %1312 = vmatpush1.msra.mxu0 0.0
    %1313 = vmatprep.subr.mxu0 0.0
    %1314 = vmatpush1.msra.mxu0 0.0
    %1315 = vmatprep.subr.mxu0 0.0
    %1316 = vmatpush1.msra.mxu0 0.0
    %1317 = vmatprep.subr.mxu0 0.0
    %1318 = vmatpush1.msra.mxu0 0.0
    %1319 = vmatprep.subr.mxu0 0.0
    %1320 = vmatpush1.msra.mxu0 0.0
    %1321 = vmatprep.subr.mxu0 0.0
    %1322 = vmatpush1.msra.mxu0 0.0
    %1323 = vmatprep.subr.mxu0 0.0
    %1324 = vmatpush1.msra.mxu0 0.0
    %1325 = vmatprep.subr.mxu0 0.0
    %1326 = vmatpush1.msra.mxu0 0.0
    %1327 = vmatprep.subr.mxu0 0.0
    %1328 = vmatpush1.msra.mxu0 0.0
    %1329 = vmatprep.subr.mxu0 0.0
    %1330 = vmatpush1.msra.mxu0 0.0
    %1331 = vmatprep.subr.mxu0 0.0
    %1332 = vmatpush1.msra.mxu0 0.0
    %1333 = vmatprep.subr.mxu0 0.0
    %1334 = vmatpush1.msra.mxu0 0.0
    %1335 = vmatprep.subr.mxu0 0.0
    %1336 = vmatpush1.msra.mxu0 0.0
    %1337 = vmatprep.mubr.f32.mxu0 0.0
    %1338 = vmatmul.mubr.f32.gmra.mrb[0].mxu0 %v1271
    %v1339 = vpop.f32.mrb[0].mxu0
    %v1340 = vadd.f32 0.0, %v1339
    %v1341 = vpop.f32.mrb[0].mxu0
    %1342 = vdwg.mxu0
    %v1343 = vld [vmem:[%s3 + $0x10] sm:$0xff]
    %v1345 = vsel %vm193, %v1264, 0
    %v1348 = vsel %vm193, %v1340, 0
    %1350 = vmatprep.subr.mxu0 0.0
    %1351 = vmatpush1.msra.mxu0 %v1343
    %1352 = vmatprep.subr.mxu0 0.0
    %1353 = vmatpush1.msra.mxu0 0.0
    %1354 = vmatprep.subr.mxu0 0.0
    %1355 = vmatpush1.msra.mxu0 0.0
    %1356 = vmatprep.subr.mxu0 0.0
    %1357 = vmatpush1.msra.mxu0 0.0
    %1358 = vmatprep.subr.mxu0 0.0
    %1359 = vmatpush1.msra.mxu0 0.0
    %1360 = vmatprep.subr.mxu0 0.0
    %1361 = vmatpush1.msra.mxu0 0.0
    %1362 = vmatprep.subr.mxu0 0.0
    %1363 = vmatpush1.msra.mxu0 0.0
    %1364 = vmatprep.subr.mxu0 0.0
    %1365 = vmatpush1.msra.mxu0 0.0
    %1366 = vmatprep.subr.mxu0 0.0
    %1367 = vmatpush1.msra.mxu0 0.0
    %1368 = vmatprep.subr.mxu0 0.0
    %1369 = vmatpush1.msra.mxu0 0.0
    %1370 = vmatprep.subr.mxu0 0.0
    %1371 = vmatpush1.msra.mxu0 0.0
    %1372 = vmatprep.subr.mxu0 0.0
    %1373 = vmatpush1.msra.mxu0 0.0
    %1374 = vmatprep.subr.mxu0 0.0
    %1375 = vmatpush1.msra.mxu0 0.0
    %1376 = vmatprep.subr.mxu0 0.0
    %1377 = vmatpush1.msra.mxu0 0.0
    %1378 = vmatprep.subr.mxu0 0.0
    %1379 = vmatpush1.msra.mxu0 0.0
    %1380 = vmatprep.subr.mxu0 0.0
    %1381 = vmatpush1.msra.mxu0 0.0
    %1382 = vmatprep.subr.mxu0 0.0
    %1383 = vmatpush1.msra.mxu0 0.0
    %1384 = vmatprep.subr.mxu0 0.0
    %1385 = vmatpush1.msra.mxu0 0.0
    %1386 = vmatprep.subr.mxu0 0.0
    %1387 = vmatpush1.msra.mxu0 0.0
    %1388 = vmatprep.subr.mxu0 0.0
    %1389 = vmatpush1.msra.mxu0 0.0
    %1390 = vmatprep.subr.mxu0 0.0
    %1391 = vmatpush1.msra.mxu0 0.0
    %1392 = vmatprep.subr.mxu0 0.0
    %1393 = vmatpush1.msra.mxu0 0.0
    %1394 = vmatprep.subr.mxu0 0.0
    %1395 = vmatpush1.msra.mxu0 0.0
    %1396 = vmatprep.subr.mxu0 0.0
    %1397 = vmatpush1.msra.mxu0 0.0
    %1398 = vmatprep.subr.mxu0 0.0
    %1399 = vmatpush1.msra.mxu0 0.0
    %1400 = vmatprep.subr.mxu0 0.0
    %1401 = vmatpush1.msra.mxu0 0.0
    %1402 = vmatprep.subr.mxu0 0.0
    %1403 = vmatpush1.msra.mxu0 0.0
    %1404 = vmatprep.subr.mxu0 0.0
    %1405 = vmatpush1.msra.mxu0 0.0
    %1406 = vmatprep.subr.mxu0 0.0
    %1407 = vmatpush1.msra.mxu0 0.0
    %1408 = vmatprep.subr.mxu0 0.0
    %1409 = vmatpush1.msra.mxu0 0.0
    %1410 = vmatprep.subr.mxu0 0.0
    %1411 = vmatpush1.msra.mxu0 0.0
    %1412 = vmatprep.subr.mxu0 0.0
    %1413 = vmatpush1.msra.mxu0 0.0
    %1414 = vmatprep.mubr.f32.mxu0 0.0
    %1415 = vmatmul.mubr.f32.gmra.mrb[0].mxu0 %v1345
    %v1416 = vpop.f32.mrb[0].mxu0
    %v1417 = vadd.f32 0.0, %v1416
    %v1418 = vpop.f32.mrb[0].mxu0
    %1419 = vmatprep.mubr.f32.mxu0 0.0
    %1420 = vmatmul.mubr.f32.gmra.mrb[0].mxu0 %v1348
    %v1421 = vpop.f32.mrb[0].mxu0
    %v1422 = vadd.f32 0.0, %v1421
    %v1423 = vpop.f32.mrb[0].mxu0
    %1424 = vdwg.mxu0
    %v1425 = vadd.f32 %v1005, %v1417
    %v1426 = vadd.f32 %v1010, %v1422
    %1427 = vrot.lane.b32.xlu0 %v178, 104
    %v1428 = vpop.permute.xlu0 %1427
    %1429 = vrot.lane.b32.xlu0 %v178, 72
    %v1430 = vpop.permute.xlu0 %1429
    %v1431 = vsel %vm193, %v1428, 0
    %v1433 = vsel %vm193, %v1430, 0
    %1435 = vmatprep.subr.mxu0 0.0
    %1436 = vmatpush1.xpose.msra.mxu0 %v1433
    %1437 = vmatprep.subr.mxu0 0.0
    %1438 = vmatpush1.xpose.msra.mxu0 0.0
    %1439 = vmatprep.subr.mxu0 0.0
    %1440 = vmatpush1.xpose.msra.mxu0 0.0
    %1441 = vmatprep.subr.mxu0 0.0
    %1442 = vmatpush1.xpose.msra.mxu0 0.0
    %1443 = vmatprep.subr.mxu0 0.0
    %1444 = vmatpush1.xpose.msra.mxu0 0.0
    %1445 = vmatprep.subr.mxu0 0.0
    %1446 = vmatpush1.xpose.msra.mxu0 0.0
    %1447 = vmatprep.subr.mxu0 0.0
    %1448 = vmatpush1.xpose.msra.mxu0 0.0
    %1449 = vmatprep.subr.mxu0 0.0
    %1450 = vmatpush1.xpose.msra.mxu0 0.0
    %1451 = vmatprep.subr.mxu0 0.0
    %1452 = vmatpush1.xpose.msra.mxu0 0.0
    %1453 = vmatprep.subr.mxu0 0.0
    %1454 = vmatpush1.xpose.msra.mxu0 0.0
    %1455 = vmatprep.subr.mxu0 0.0
    %1456 = vmatpush1.xpose.msra.mxu0 0.0
    %1457 = vmatprep.subr.mxu0 0.0
    %1458 = vmatpush1.xpose.msra.mxu0 0.0
    %1459 = vmatprep.subr.mxu0 0.0
    %1460 = vmatpush1.xpose.msra.mxu0 0.0
    %1461 = vmatprep.subr.mxu0 0.0
    %1462 = vmatpush1.xpose.msra.mxu0 0.0
    %1463 = vmatprep.subr.mxu0 0.0
    %1464 = vmatpush1.xpose.msra.mxu0 0.0
    %1465 = vmatprep.subr.mxu0 0.0
    %1466 = vmatpush1.xpose.msra.mxu0 0.0
    %1467 = vmatprep.subr.mxu0 0.0
    %1468 = vmatpush1.xpose.msra.mxu0 0.0
    %1469 = vmatprep.subr.mxu0 0.0
    %1470 = vmatpush1.xpose.msra.mxu0 0.0
    %1471 = vmatprep.subr.mxu0 0.0
    %1472 = vmatpush1.xpose.msra.mxu0 0.0
    %1473 = vmatprep.subr.mxu0 0.0
    %1474 = vmatpush1.xpose.msra.mxu0 0.0
    %1475 = vmatprep.subr.mxu0 0.0
    %1476 = vmatpush1.xpose.msra.mxu0 0.0
    %1477 = vmatprep.subr.mxu0 0.0
    %1478 = vmatpush1.xpose.msra.mxu0 0.0
    %1479 = vmatprep.subr.mxu0 0.0
    %1480 = vmatpush1.xpose.msra.mxu0 0.0
    %1481 = vmatprep.subr.mxu0 0.0
    %1482 = vmatpush1.xpose.msra.mxu0 0.0
    %1483 = vmatprep.subr.mxu0 0.0
    %1484 = vmatpush1.xpose.msra.mxu0 0.0
    %1485 = vmatprep.subr.mxu0 0.0
    %1486 = vmatpush1.xpose.msra.mxu0 0.0
    %1487 = vmatprep.subr.mxu0 0.0
    %1488 = vmatpush1.xpose.msra.mxu0 0.0
    %1489 = vmatprep.subr.mxu0 0.0
    %1490 = vmatpush1.xpose.msra.mxu0 0.0
    %1491 = vmatprep.subr.mxu0 0.0
    %1492 = vmatpush1.xpose.msra.mxu0 0.0
    %1493 = vmatprep.subr.mxu0 0.0
    %1494 = vmatpush1.xpose.msra.mxu0 0.0
    %1495 = vmatprep.subr.mxu0 0.0
    %1496 = vmatpush1.xpose.msra.mxu0 0.0
    %1497 = vmatprep.subr.mxu0 0.0
    %1498 = vmatpush1.xpose.msra.mxu0 0.0
    %1499 = vmatprep.mubr.f32.mxu0 0.0
    %1500 = vmatmul.mubr.f32.gmra.mrb[0].mxu0 %v1431
    %v1501 = vpop.f32.mrb[0].mxu0
    %v1502 = vadd.f32 %v189, %v1501
    %v1503 = vpop.f32.mrb[0].mxu0
    %1504 = vdwg.mxu0
    %1505 = vrot.lane.b32.xlu0 %v183, 104
    %v1506 = vpop.permute.xlu0 %1505
    %1507 = vrot.lane.b32.xlu0 %v183, 72
    %v1508 = vpop.permute.xlu0 %1507
    %v1509 = vsel %vm193, %v1506, 0
    %v1511 = vsel %vm193, %v1508, 0
    %1513 = vmatprep.subr.mxu0 0.0
    %1514 = vmatpush1.xpose.msra.mxu0 %v1511
    %1515 = vmatprep.subr.mxu0 0.0
    %1516 = vmatpush1.xpose.msra.mxu0 0.0
    %1517 = vmatprep.subr.mxu0 0.0
    %1518 = vmatpush1.xpose.msra.mxu0 0.0
    %1519 = vmatprep.subr.mxu0 0.0
    %1520 = vmatpush1.xpose.msra.mxu0 0.0
    %1521 = vmatprep.subr.mxu0 0.0
    %1522 = vmatpush1.xpose.msra.mxu0 0.0
    %1523 = vmatprep.subr.mxu0 0.0
    %1524 = vmatpush1.xpose.msra.mxu0 0.0
    %1525 = vmatprep.subr.mxu0 0.0
    %1526 = vmatpush1.xpose.msra.mxu0 0.0
    %1527 = vmatprep.subr.mxu0 0.0
    %1528 = vmatpush1.xpose.msra.mxu0 0.0
    %1529 = vmatprep.subr.mxu0 0.0
    %1530 = vmatpush1.xpose.msra.mxu0 0.0
    %1531 = vmatprep.subr.mxu0 0.0
    %1532 = vmatpush1.xpose.msra.mxu0 0.0
    %1533 = vmatprep.subr.mxu0 0.0
    %1534 = vmatpush1.xpose.msra.mxu0 0.0
    %1535 = vmatprep.subr.mxu0 0.0
    %1536 = vmatpush1.xpose.msra.mxu0 0.0
    %1537 = vmatprep.subr.mxu0 0.0
    %1538 = vmatpush1.xpose.msra.mxu0 0.0
    %1539 = vmatprep.subr.mxu0 0.0
    %1540 = vmatpush1.xpose.msra.mxu0 0.0
    %1541 = vmatprep.subr.mxu0 0.0
    %1542 = vmatpush1.xpose.msra.mxu0 0.0
    %1543 = vmatprep.subr.mxu0 0.0
    %1544 = vmatpush1.xpose.msra.mxu0 0.0
    %1545 = vmatprep.subr.mxu0 0.0
    %1546 = vmatpush1.xpose.msra.mxu0 0.0
    %1547 = vmatprep.subr.mxu0 0.0
    %1548 = vmatpush1.xpose.msra.mxu0 0.0
    %1549 = vmatprep.subr.mxu0 0.0
    %1550 = vmatpush1.xpose.msra.mxu0 0.0
    %1551 = vmatprep.subr.mxu0 0.0
    %1552 = vmatpush1.xpose.msra.mxu0 0.0
    %1553 = vmatprep.subr.mxu0 0.0
    %1554 = vmatpush1.xpose.msra.mxu0 0.0
    %1555 = vmatprep.subr.mxu0 0.0
    %1556 = vmatpush1.xpose.msra.mxu0 0.0
    %1557 = vmatprep.subr.mxu0 0.0
    %1558 = vmatpush1.xpose.msra.mxu0 0.0
    %1559 = vmatprep.subr.mxu0 0.0
    %1560 = vmatpush1.xpose.msra.mxu0 0.0
    %1561 = vmatprep.subr.mxu0 0.0
    %1562 = vmatpush1.xpose.msra.mxu0 0.0
    %1563 = vmatprep.subr.mxu0 0.0
    %1564 = vmatpush1.xpose.msra.mxu0 0.0
    %1565 = vmatprep.subr.mxu0 0.0
    %1566 = vmatpush1.xpose.msra.mxu0 0.0
    %1567 = vmatprep.subr.mxu0 0.0
    %1568 = vmatpush1.xpose.msra.mxu0 0.0
    %1569 = vmatprep.subr.mxu0 0.0
    %1570 = vmatpush1.xpose.msra.mxu0 0.0
    %1571 = vmatprep.subr.mxu0 0.0
    %1572 = vmatpush1.xpose.msra.mxu0 0.0
    %1573 = vmatprep.subr.mxu0 0.0
    %1574 = vmatpush1.xpose.msra.mxu0 0.0
    %1575 = vmatprep.subr.mxu0 0.0
    %1576 = vmatpush1.xpose.msra.mxu0 0.0
    %1577 = vmatprep.mubr.f32.mxu0 0.0
    %1578 = vmatmul.mubr.f32.gmra.mrb[0].mxu0 %v1509
    %v1579 = vpop.f32.mrb[0].mxu0
    %v1580 = vadd.f32 %v189, %v1579
    %v1581 = vpop.f32.mrb[0].mxu0
    %1582 = vdwg.mxu0
    %v1583 = vsel %vm193, %v1502, -inf
    %1584 = vmax.xlane.f32.xlu0 %v1583
    %v1585 = vpop.xlane.xlu0 %1584
    %v1586 = vsel %vm193, %v1580, -inf
    %1587 = vmax.xlane.f32.xlu0 %v1586
    %v1588 = vpop.xlane.xlu0 %1587
    %v1589 = vsub.f32 %v1502, %v1585
    %v1590 = vsub.f32 %v1580, %v1588
    %v1591 = vmul.f32 %v1589, 1.442695
    %v1592 = vpow.pop %v1591
    %v1593 = vmul.f32 %v1590, 1.442695
    %v1594 = vpow.pop %v1593
    %v1595 = vsel %vm193, %v1592, 0.0
    %1596 = vadd.xlane.f32.xlu0 %v1595
    %v1597 = vpop.xlane.xlu0 %1596
    %v1598 = vsel %vm193, %v1594, 0.0
    %1599 = vadd.xlane.f32.xlu0 %v1598
    %v1600 = vpop.xlane.xlu0 %1599
    %v1601 = vrcp.pop %v1597
    %v1602 = vrcp.pop %v1600
    %v1603 = vmul.f32 %v1592, %v1601
    %v1604 = vmul.f32 %v1594, %v1602
    %1605 = vrot.lane.b32.xlu0 %v178, 40
    %v1606 = vpop.permute.xlu0 %1605
    %v1609 = vsel %vm193, %v1603, 0
    %1611 = vmatprep.subr.mxu0 0.0
    %1612 = vmatpush1.msra.mxu0 %v1606
    %1613 = vmatprep.subr.mxu0 0.0
    %1614 = vmatpush1.msra.mxu0 0.0
    %1615 = vmatprep.subr.mxu0 0.0
    %1616 = vmatpush1.msra.mxu0 0.0
    %1617 = vmatprep.subr.mxu0 0.0
    %1618 = vmatpush1.msra.mxu0 0.0
    %1619 = vmatprep.subr.mxu0 0.0
    %1620 = vmatpush1.msra.mxu0 0.0
    %1621 = vmatprep.subr.mxu0 0.0
    %1622 = vmatpush1.msra.mxu0 0.0
    %1623 = vmatprep.subr.mxu0 0.0
    %1624 = vmatpush1.msra.mxu0 0.0
    %1625 = vmatprep.subr.mxu0 0.0
    %1626 = vmatpush1.msra.mxu0 0.0
    %1627 = vmatprep.subr.mxu0 0.0
    %1628 = vmatpush1.msra.mxu0 0.0
    %1629 = vmatprep.subr.mxu0 0.0
    %1630 = vmatpush1.msra.mxu0 0.0
    %1631 = vmatprep.subr.mxu0 0.0
    %1632 = vmatpush1.msra.mxu0 0.0
    %1633 = vmatprep.subr.mxu0 0.0
    %1634 = vmatpush1.msra.mxu0 0.0
    %1635 = vmatprep.subr.mxu0 0.0
    %1636 = vmatpush1.msra.mxu0 0.0
    %1637 = vmatprep.subr.mxu0 0.0
    %1638 = vmatpush1.msra.mxu0 0.0
    %1639 = vmatprep.subr.mxu0 0.0
    %1640 = vmatpush1.msra.mxu0 0.0
    %1641 = vmatprep.subr.mxu0 0.0
    %1642 = vmatpush1.msra.mxu0 0.0
    %1643 = vmatprep.subr.mxu0 0.0
    %1644 = vmatpush1.msra.mxu0 0.0
    %1645 = vmatprep.subr.mxu0 0.0
    %1646 = vmatpush1.msra.mxu0 0.0
    %1647 = vmatprep.subr.mxu0 0.0
    %1648 = vmatpush1.msra.mxu0 0.0
    %1649 = vmatprep.subr.mxu0 0.0
    %1650 = vmatpush1.msra.mxu0 0.0
    %1651 = vmatprep.subr.mxu0 0.0
    %1652 = vmatpush1.msra.mxu0 0.0
    %1653 = vmatprep.subr.mxu0 0.0
    %1654 = vmatpush1.msra.mxu0 0.0
    %1655 = vmatprep.subr.mxu0 0.0
    %1656 = vmatpush1.msra.mxu0 0.0
    %1657 = vmatprep.subr.mxu0 0.0
    %1658 = vmatpush1.msra.mxu0 0.0
    %1659 = vmatprep.subr.mxu0 0.0
    %1660 = vmatpush1.msra.mxu0 0.0
    %1661 = vmatprep.subr.mxu0 0.0
    %1662 = vmatpush1.msra.mxu0 0.0
    %1663 = vmatprep.subr.mxu0 0.0
    %1664 = vmatpush1.msra.mxu0 0.0
    %1665 = vmatprep.subr.mxu0 0.0
    %1666 = vmatpush1.msra.mxu0 0.0
    %1667 = vmatprep.subr.mxu0 0.0
    %1668 = vmatpush1.msra.mxu0 0.0
    %1669 = vmatprep.subr.mxu0 0.0
    %1670 = vmatpush1.msra.mxu0 0.0
    %1671 = vmatprep.subr.mxu0 0.0
    %1672 = vmatpush1.msra.mxu0 0.0
    %1673 = vmatprep.subr.mxu0 0.0
    %1674 = vmatpush1.msra.mxu0 0.0
    %1675 = vmatprep.mubr.f32.mxu0 0.0
    %1676 = vmatmul.mubr.f32.gmra.mrb[0].mxu0 %v1609
    %v1677 = vpop.f32.mrb[0].mxu0
    %v1678 = vadd.f32 0.0, %v1677
    %v1679 = vpop.f32.mrb[0].mxu0
    %1680 = vdwg.mxu0
    %1681 = vrot.lane.b32.xlu0 %v183, 40
    %v1682 = vpop.permute.xlu0 %1681
    %v1685 = vsel %vm193, %v1604, 0
    %1687 = vmatprep.subr.mxu0 0.0
    %1688 = vmatpush1.msra.mxu0 %v1682
    %1689 = vmatprep.subr.mxu0 0.0
    %1690 = vmatpush1.msra.mxu0 0.0
    %1691 = vmatprep.subr.mxu0 0.0
    %1692 = vmatpush1.msra.mxu0 0.0
    %1693 = vmatprep.subr.mxu0 0.0
    %1694 = vmatpush1.msra.mxu0 0.0
    %1695 = vmatprep.subr.mxu0 0.0
    %1696 = vmatpush1.msra.mxu0 0.0
    %1697 = vmatprep.subr.mxu0 0.0
    %1698 = vmatpush1.msra.mxu0 0.0
    %1699 = vmatprep.subr.mxu0 0.0
    %1700 = vmatpush1.msra.mxu0 0.0
    %1701 = vmatprep.subr.mxu0 0.0
    %1702 = vmatpush1.msra.mxu0 0.0
    %1703 = vmatprep.subr.mxu0 0.0
    %1704 = vmatpush1.msra.mxu0 0.0
    %1705 = vmatprep.subr.mxu0 0.0
    %1706 = vmatpush1.msra.mxu0 0.0
    %1707 = vmatprep.subr.mxu0 0.0
    %1708 = vmatpush1.msra.mxu0 0.0
    %1709 = vmatprep.subr.mxu0 0.0
    %1710 = vmatpush1.msra.mxu0 0.0
    %1711 = vmatprep.subr.mxu0 0.0
    %1712 = vmatpush1.msra.mxu0 0.0
    %1713 = vmatprep.subr.mxu0 0.0
    %1714 = vmatpush1.msra.mxu0 0.0
    %1715 = vmatprep.subr.mxu0 0.0
    %1716 = vmatpush1.msra.mxu0 0.0
    %1717 = vmatprep.subr.mxu0 0.0
    %1718 = vmatpush1.msra.mxu0 0.0
    %1719 = vmatprep.subr.mxu0 0.0
    %1720 = vmatpush1.msra.mxu0 0.0
    %1721 = vmatprep.subr.mxu0 0.0
    %1722 = vmatpush1.msra.mxu0 0.0
    %1723 = vmatprep.subr.mxu0 0.0
    %1724 = vmatpush1.msra.mxu0 0.0
    %1725 = vmatprep.subr.mxu0 0.0
    %1726 = vmatpush1.msra.mxu0 0.0
    %1727 = vmatprep.subr.mxu0 0.0
    %1728 = vmatpush1.msra.mxu0 0.0
    %1729 = vmatprep.subr.mxu0 0.0
    %1730 = vmatpush1.msra.mxu0 0.0
    %1731 = vmatprep.subr.mxu0 0.0
    %1732 = vmatpush1.msra.mxu0 0.0
    %1733 = vmatprep.subr.mxu0 0.0
    %1734 = vmatpush1.msra.mxu0 0.0
    %1735 = vmatprep.subr.mxu0 0.0
    %1736 = vmatpush1.msra.mxu0 0.0
    %1737 = vmatprep.subr.mxu0 0.0
    %1738 = vmatpush1.msra.mxu0 0.0
    %1739 = vmatprep.subr.mxu0 0.0
    %1740 = vmatpush1.msra.mxu0 0.0
    %1741 = vmatprep.subr.mxu0 0.0
    %1742 = vmatpush1.msra.mxu0 0.0
    %1743 = vmatprep.subr.mxu0 0.0
    %1744 = vmatpush1.msra.mxu0 0.0
    %1745 = vmatprep.subr.mxu0 0.0
    %1746 = vmatpush1.msra.mxu0 0.0
    %1747 = vmatprep.subr.mxu0 0.0
    %1748 = vmatpush1.msra.mxu0 0.0
    %1749 = vmatprep.subr.mxu0 0.0
    %1750 = vmatpush1.msra.mxu0 0.0
    %1751 = vmatprep.mubr.f32.mxu0 0.0
    %1752 = vmatmul.mubr.f32.gmra.mrb[0].mxu0 %v1685
    %v1753 = vpop.f32.mrb[0].mxu0
    %v1754 = vadd.f32 0.0, %v1753
    %v1755 = vpop.f32.mrb[0].mxu0
    %1756 = vdwg.mxu0
    %v1757 = vld [vmem:[%s3 + $0x18] sm:$0xff]
    %v1759 = vsel %vm193, %v1678, 0
    %v1762 = vsel %vm193, %v1754, 0
    %1764 = vmatprep.subr.mxu0 0.0
    %1765 = vmatpush1.msra.mxu0 %v1757
    %1766 = vmatprep.subr.mxu0 0.0
    %1767 = vmatpush1.msra.mxu0 0.0
    %1768 = vmatprep.subr.mxu0 0.0
    %1769 = vmatpush1.msra.mxu0 0.0
    %1770 = vmatprep.subr.mxu0 0.0
    %1771 = vmatpush1.msra.mxu0 0.0
    %1772 = vmatprep.subr.mxu0 0.0
    %1773 = vmatpush1.msra.mxu0 0.0
    %1774 = vmatprep.subr.mxu0 0.0
    %1775 = vmatpush1.msra.mxu0 0.0
    %1776 = vmatprep.subr.mxu0 0.0
    %1777 = vmatpush1.msra.mxu0 0.0
    %1778 = vmatprep.subr.mxu0 0.0
    %1779 = vmatpush1.msra.mxu0 0.0
    %1780 = vmatprep.subr.mxu0 0.0
    %1781 = vmatpush1.msra.mxu0 0.0
    %1782 = vmatprep.subr.mxu0 0.0
    %1783 = vmatpush1.msra.mxu0 0.0
    %1784 = vmatprep.subr.mxu0 0.0
    %1785 = vmatpush1.msra.mxu0 0.0
    %1786 = vmatprep.subr.mxu0 0.0
    %1787 = vmatpush1.msra.mxu0 0.0
    %1788 = vmatprep.subr.mxu0 0.0
    %1789 = vmatpush1.msra.mxu0 0.0
    %1790 = vmatprep.subr.mxu0 0.0
    %1791 = vmatpush1.msra.mxu0 0.0
    %1792 = vmatprep.subr.mxu0 0.0
    %1793 = vmatpush1.msra.mxu0 0.0
    %1794 = vmatprep.subr.mxu0 0.0
    %1795 = vmatpush1.msra.mxu0 0.0
    %1796 = vmatprep.subr.mxu0 0.0
    %1797 = vmatpush1.msra.mxu0 0.0
    %1798 = vmatprep.subr.mxu0 0.0
    %1799 = vmatpush1.msra.mxu0 0.0
    %1800 = vmatprep.subr.mxu0 0.0
    %1801 = vmatpush1.msra.mxu0 0.0
    %1802 = vmatprep.subr.mxu0 0.0
    %1803 = vmatpush1.msra.mxu0 0.0
    %1804 = vmatprep.subr.mxu0 0.0
    %1805 = vmatpush1.msra.mxu0 0.0
    %1806 = vmatprep.subr.mxu0 0.0
    %1807 = vmatpush1.msra.mxu0 0.0
    %1808 = vmatprep.subr.mxu0 0.0
    %1809 = vmatpush1.msra.mxu0 0.0
    %1810 = vmatprep.subr.mxu0 0.0
    %1811 = vmatpush1.msra.mxu0 0.0
    %1812 = vmatprep.subr.mxu0 0.0
    %1813 = vmatpush1.msra.mxu0 0.0
    %1814 = vmatprep.subr.mxu0 0.0
    %1815 = vmatpush1.msra.mxu0 0.0
    %1816 = vmatprep.subr.mxu0 0.0
    %1817 = vmatpush1.msra.mxu0 0.0
    %1818 = vmatprep.subr.mxu0 0.0
    %1819 = vmatpush1.msra.mxu0 0.0
    %1820 = vmatprep.subr.mxu0 0.0
    %1821 = vmatpush1.msra.mxu0 0.0
    %1822 = vmatprep.subr.mxu0 0.0
    %1823 = vmatpush1.msra.mxu0 0.0
    %1824 = vmatprep.subr.mxu0 0.0
    %1825 = vmatpush1.msra.mxu0 0.0
    %1826 = vmatprep.subr.mxu0 0.0
    %1827 = vmatpush1.msra.mxu0 0.0
    %1828 = vmatprep.mubr.f32.mxu0 0.0
    %1829 = vmatmul.mubr.f32.gmra.mrb[0].mxu0 %v1759
    %v1830 = vpop.f32.mrb[0].mxu0
    %v1831 = vadd.f32 0.0, %v1830
    %v1832 = vpop.f32.mrb[0].mxu0
    %1833 = vmatprep.mubr.f32.mxu0 0.0
    %1834 = vmatmul.mubr.f32.gmra.mrb[0].mxu0 %v1762
    %v1835 = vpop.f32.mrb[0].mxu0
    %v1836 = vadd.f32 0.0, %v1835
    %v1837 = vpop.f32.mrb[0].mxu0
    %1838 = vdwg.mxu0
    %v1839 = vadd.f32 %v1425, %v1831
    %v1840 = vadd.f32 %v1426, %v1836
    %v1841 = vld [vmem:[%s4] sm:$0x1]
    %v1843 = vlaneseq
    %v1844 = vshrl.u32 %v1843, 7
    %v1845 = vsub.s32 0, %v1844
    %v1846 = vrot.slane %v1841, %v1845
    %v1848 = vadd.f32 %v1839, %v1846
    %v1849 = vadd.f32 %v1840, %v1846
    %v1850 = vadd.f32 %v1848, %v64
    %v1851 = vadd.f32 %v1849, %v65
    %v1852 = vsel %vm66, %v1850, 0.0
    %1853 = vadd.xlane.f32.xlu0 %v1852
    %v1854 = vpop.xlane.xlu0 %1853
    %v1855 = vsel %vm66, %v1851, 0.0
    %1856 = vadd.xlane.f32.xlu0 %v1855
    %v1857 = vpop.xlane.xlu0 %1856
    %v1858 = vmul.f32 %v1854, %v73
    %v1859 = vmul.f32 %v1857, %v73
    %v1860 = vsub.f32 %v1850, %v1858
    %v1861 = vsub.f32 %v1851, %v1859
    %v1862 = vmul.f32 %v1860, %v1860
    %v1863 = vmul.f32 %v1861, %v1861
    %v1864 = vsel %vm66, %v1862, 0.0
    %1865 = vadd.xlane.f32.xlu0 %v1864
    %v1866 = vpop.xlane.xlu0 %1865
    %v1867 = vsel %vm66, %v1863, 0.0
    %1868 = vadd.xlane.f32.xlu0 %v1867
    %v1869 = vpop.xlane.xlu0 %1868
    %v1870 = vmul.f32 %v1866, %v73
    %v1871 = vmul.f32 %v1869, %v73
    %v1872 = vadd.f32 %v1870, 1e-06
    %v1873 = vadd.f32 %v1871, 1e-06
    %v1874 = vrsqrt.pop %v1872
    %v1875 = vrsqrt.pop %v1873
    %v1876 = vmul.f32 %v1860, %v1874
    %v1877 = vmul.f32 %v1861, %v1875
    %v1878 = vld [vmem:[#allocation5] sm:$0xff]
    %v1879 = vld [vmem:[#allocation5 + $0x8] sm:$0xff]
    %v1880 = vld [vmem:[#allocation5 + $0x10] sm:$0xff]
    %v1881 = vld [vmem:[#allocation5 + $0x18] sm:$0xff]
    %v1882 = vld [vmem:[%s7] sm:$0x1]
    %v1884 = vlaneseq
    %v1885 = vshrl.u32 %v1884, 7
    %v1886 = vsub.s32 0, %v1885
    %v1887 = vrot.slane %v1882, %v1886
    %v1890 = vsel %vm66, %v1876, 0
    %v1893 = vsel %vm66, %v1877, 0
    %1895 = vmatprep.subr.mxu0 0.0
    %1896 = vmatpush1.msra.mxu0 %v1878
    %1897 = vmatprep.subr.mxu0 0.0
    %1898 = vmatpush1.msra.mxu0 %v1879
    %1899 = vmatprep.subr.mxu0 0.0
    %1900 = vmatpush1.msra.mxu0 %v1880
    %1901 = vmatprep.subr.mxu0 0.0
    %1902 = vmatpush1.msra.mxu0 %v1881
    %1903 = vmatprep.subr.mxu0 0.0
    %1904 = vmatpush1.msra.mxu0 0.0
    %1905 = vmatprep.subr.mxu0 0.0
    %1906 = vmatpush1.msra.mxu0 0.0
    %1907 = vmatprep.subr.mxu0 0.0
    %1908 = vmatpush1.msra.mxu0 0.0
    %1909 = vmatprep.subr.mxu0 0.0
    %1910 = vmatpush1.msra.mxu0 0.0
    %1911 = vmatprep.subr.mxu0 0.0
    %1912 = vmatpush1.msra.mxu0 0.0
    %1913 = vmatprep.subr.mxu0 0.0
    %1914 = vmatpush1.msra.mxu0 0.0
    %1915 = vmatprep.subr.mxu0 0.0
    %1916 = vmatpush1.msra.mxu0 0.0
    %1917 = vmatprep.subr.mxu0 0.0
    %1918 = vmatpush1.msra.mxu0 0.0
    %1919 = vmatprep.subr.mxu0 0.0
    %1920 = vmatpush1.msra.mxu0 0.0
    %1921 = vmatprep.subr.mxu0 0.0
    %1922 = vmatpush1.msra.mxu0 0.0
    %1923 = vmatprep.subr.mxu0 0.0
    %1924 = vmatpush1.msra.mxu0 0.0
    %1925 = vmatprep.subr.mxu0 0.0
    %1926 = vmatpush1.msra.mxu0 0.0
    %1927 = vmatprep.subr.mxu0 0.0
    %1928 = vmatpush1.msra.mxu0 0.0
    %1929 = vmatprep.subr.mxu0 0.0
    %1930 = vmatpush1.msra.mxu0 0.0
    %1931 = vmatprep.subr.mxu0 0.0
    %1932 = vmatpush1.msra.mxu0 0.0
    %1933 = vmatprep.subr.mxu0 0.0
    %1934 = vmatpush1.msra.mxu0 0.0
    %1935 = vmatprep.subr.mxu0 0.0
    %1936 = vmatpush1.msra.mxu0 0.0
    %1937 = vmatprep.subr.mxu0 0.0
    %1938 = vmatpush1.msra.mxu0 0.0
    %1939 = vmatprep.subr.mxu0 0.0
    %1940 = vmatpush1.msra.mxu0 0.0
    %1941 = vmatprep.subr.mxu0 0.0
    %1942 = vmatpush1.msra.mxu0 0.0
    %1943 = vmatprep.subr.mxu0 0.0
    %1944 = vmatpush1.msra.mxu0 0.0
    %1945 = vmatprep.subr.mxu0 0.0
    %1946 = vmatpush1.msra.mxu0 0.0
    %1947 = vmatprep.subr.mxu0 0.0
    %1948 = vmatpush1.msra.mxu0 0.0
    %1949 = vmatprep.subr.mxu0 0.0
    %1950 = vmatpush1.msra.mxu0 0.0
    %1951 = vmatprep.subr.mxu0 0.0
    %1952 = vmatpush1.msra.mxu0 0.0
    %1953 = vmatprep.subr.mxu0 0.0
    %1954 = vmatpush1.msra.mxu0 0.0
    %1955 = vmatprep.subr.mxu0 0.0
    %1956 = vmatpush1.msra.mxu0 0.0
    %1957 = vmatprep.subr.mxu0 0.0
    %1958 = vmatpush1.msra.mxu0 0.0
    %1959 = vmatprep.mubr.f32.mxu0 0.0
    %1960 = vmatmul.mubr.f32.gmra.mrb[0].mxu0 %v1890
    %v1961 = vpop.f32.mrb[0].mxu0
    %v1962 = vadd.f32 %v1887, %v1961
    %v1963 = vpop.f32.mrb[0].mxu0
    %1964 = vmatprep.mubr.f32.mxu0 0.0
    %1965 = vmatmul.mubr.f32.gmra.mrb[0].mxu0 %v1893
    %v1966 = vpop.f32.mrb[0].mxu0
    %v1967 = vadd.f32 %v1887, %v1966
    %v1968 = vpop.f32.mrb[0].mxu0
    %1969 = vdwg.mxu0
    %v1970 = vmul.f32 %v1962, %v1962
    %v1971 = vmul.f32 %v1967, %v1967
    %v1972 = vmul.f32 %v1962, %v1970
    %v1973 = vmul.f32 %v1967, %v1971
    %v1974 = vmul.f32 %v1972, 0.044715
    %v1975 = vmul.f32 %v1973, 0.044715
    %v1976 = vadd.f32 %v1962, %v1974
    %v1977 = vadd.f32 %v1967, %v1975
    %v1978 = vmul.f32 %v1976, 0.7978846
    %v1979 = vmul.f32 %v1977, 0.7978846
    %v1980 = vtanh.pop %v1978
    %v1981 = vtanh.pop %v1979
    %v1982 = vadd.f32 %v1980, 1.0
    %v1983 = vadd.f32 %v1981, 1.0
    %v1984 = vmul.f32 %v1982, 0.5
    %v1985 = vmul.f32 %v1983, 0.5
    %v1986 = vmul.f32 %v1962, %v1984
    %v1987 = vmul.f32 %v1967, %v1985
    %v1988 = vld [vmem:[%s8] sm:$0xff]
    %v1989 = vld [vmem:[%s8 + $0x8] sm:$0xff]
    %v1990 = vld [vmem:[%s8 + $0x10] sm:$0xff]
    %v1991 = vld [vmem:[%s8 + $0x18] sm:$0xff]
    %v1992 = vld [vmem:[%s8 + $0x20] sm:$0xff]
    %v1993 = vld [vmem:[%s8 + $0x28] sm:$0xff]
    %v1994 = vld [vmem:[%s8 + $0x30] sm:$0xff]
    %v1995 = vld [vmem:[%s8 + $0x38] sm:$0xff]
    %v1996 = vld [vmem:[%s9] sm:$0x1]
    %v1998 = vlaneseq
    %v1999 = vshrl.u32 %v1998, 7
    %v2000 = vsub.s32 0, %v1999
    %v2001 = vrot.slane %v1996, %v2000
    %vm2003 = vcmask 523264
    %v2005 = vsel %vm2003, %v1986, 0
    %v2008 = vsel %vm2003, %v1987, 0
    %2010 = vmatprep.subr.mxu0 0.0
    %2011 = vmatpush1.msra.mxu0 %v1988
    %2012 = vmatprep.subr.mxu0 0.0
    %2013 = vmatpush1.msra.mxu0 %v1989
    %2014 = vmatprep.subr.mxu0 0.0
    %2015 = vmatpush1.msra.mxu0 %v1990
    %2016 = vmatprep.subr.mxu0 0.0
    %2017 = vmatpush1.msra.mxu0 %v1991
    %2018 = vmatprep.subr.mxu0 0.0
    %2019 = vmatpush1.msra.mxu0 %v1992
    %2020 = vmatprep.subr.mxu0 0.0
    %2021 = vmatpush1.msra.mxu0 %v1993
    %2022 = vmatprep.subr.mxu0 0.0
    %2023 = vmatpush1.msra.mxu0 %v1994
    %2024 = vmatprep.subr.mxu0 0.0
    %2025 = vmatpush1.msra.mxu0 %v1995
    %2026 = vmatprep.subr.mxu0 0.0
    %2027 = vmatpush1.msra.mxu0 0.0
    %2028 = vmatprep.subr.mxu0 0.0
    %2029 = vmatpush1.msra.mxu0 0.0
    %2030 = vmatprep.subr.mxu0 0.0
    %2031 = vmatpush1.msra.mxu0 0.0
    %2032 = vmatprep.subr.mxu0 0.0
    %2033 = vmatpush1.msra.mxu0 0.0
    %2034 = vmatprep.subr.mxu0 0.0
    %2035 = vmatpush1.msra.mxu0 0.0
    %2036 = vmatprep.subr.mxu0 0.0
    %2037 = vmatpush1.msra.mxu0 0.0
    %2038 = vmatprep.subr.mxu0 0.0
    %2039 = vmatpush1.msra.mxu0 0.0
    %2040 = vmatprep.subr.mxu0 0.0
    %2041 = vmatpush1.msra.mxu0 0.0
    %2042 = vmatprep.subr.mxu0 0.0
    %2043 = vmatpush1.msra.mxu0 0.0
    %2044 = vmatprep.subr.mxu0 0.0
    %2045 = vmatpush1.msra.mxu0 0.0
    %2046 = vmatprep.subr.mxu0 0.0
    %2047 = vmatpush1.msra.mxu0 0.0
    %2048 = vmatprep.subr.mxu0 0.0
    %2049 = vmatpush1.msra.mxu0 0.0
    %2050 = vmatprep.subr.mxu0 0.0
    %2051 = vmatpush1.msra.mxu0 0.0
    %2052 = vmatprep.subr.mxu0 0.0
    %2053 = vmatpush1.msra.mxu0 0.0
    %2054 = vmatprep.subr.mxu0 0.0
    %2055 = vmatpush1.msra.mxu0 0.0
    %2056 = vmatprep.subr.mxu0 0.0
    %2057 = vmatpush1.msra.mxu0 0.0
    %2058 = vmatprep.subr.mxu0 0.0
    %2059 = vmatpush1.msra.mxu0 0.0
    %2060 = vmatprep.subr.mxu0 0.0
    %2061 = vmatpush1.msra.mxu0 0.0
    %2062 = vmatprep.subr.mxu0 0.0
    %2063 = vmatpush1.msra.mxu0 0.0
    %2064 = vmatprep.subr.mxu0 0.0
    %2065 = vmatpush1.msra.mxu0 0.0
    %2066 = vmatprep.subr.mxu0 0.0
    %2067 = vmatpush1.msra.mxu0 0.0
    %2068 = vmatprep.subr.mxu0 0.0
    %2069 = vmatpush1.msra.mxu0 0.0
    %2070 = vmatprep.subr.mxu0 0.0
    %2071 = vmatpush1.msra.mxu0 0.0
    %2072 = vmatprep.subr.mxu0 0.0
    %2073 = vmatpush1.msra.mxu0 0.0
    %2074 = vmatprep.mubr.f32.mxu0 0.0
    %2075 = vmatmul.mubr.f32.gmra.mrb[0].mxu0 %v2005
    %v2076 = vpop.f32.mrb[0].mxu0
    %v2077 = vadd.f32 %v2001, %v2076
    %v2078 = vpop.f32.mrb[0].mxu0
    %2079 = vmatprep.mubr.f32.mxu0 0.0
    %2080 = vmatmul.mubr.f32.gmra.mrb[0].mxu0 %v2008
    %v2081 = vpop.f32.mrb[0].mxu0
    %v2082 = vadd.f32 %v2001, %v2081
    %v2083 = vpop.f32.mrb[0].mxu0
    %2084 = vdwg.mxu0
    %v2085 = vadd.f32 %v2077, %v1850
    %v2086 = vadd.f32 %v2082, %v1851
    %2087 = vst.msk [vmem:[#allocation7] sm:$0xff] %vm66, %v2085
    %2088 = vst.msk [vmem:[#allocation7 + $0x8] sm:$0xff] %vm66, %v2086
    // Predicated region
    $region50: #{tpu_custom_call.1} parent=1 // pred_check
      _
    $region51: #{tpu_custom_call.1} parent=1 // pred_check_branch
      %2090 = sbr.rel (0) target = $region53
    $region52: #{tpu_custom_call.1} parent=1 // pred_region
      %s2092 = ssub.s32 256, 256
      %2093 = vsyncadd [#allocation4], %s2092
      %s2094 = sshll.u32 [#allocation7], 4
      %s2095 = int_to_ptr.vmem [resolvable:$true] %s2094
      %2100 = dma.vmem_to_hbm [thread:$0]  %s2095, 256, %s10, [#allocation4], 128, 128, 8
    $region53: #{tpu_custom_call.1} parent=1 // pred_fallthru
      _
    // Predicated region
    $region54: #{tpu_custom_call.1} parent=1 // pred_check
      _
    $region55: #{tpu_custom_call.1} parent=1 // pred_check_branch
      %2102 = sbr.rel (0) target = $region57
    $region56: #{tpu_custom_call.1} parent=1 // pred_region
      %2103 = dma.done [#allocation4], 256
    $region57: #{tpu_custom_call.1} parent=1 // pred_fallthru
      _
    %2104 = vsyncpa [#allocation3], 1
    %2105 = vsyncpa [#allocation6], 1
    %2106 = vsyncpa [#allocation4], 1

</llo_original>
